<compile_context>
chip_gen: v6e
topology: v6e:2x2x1
jax: 0.10.0
libtpu: 0.0.40
codegen_flags: <defaults>
</compile_context>

<pallas_src>
import functools
import math

import jax
import jax.numpy as jnp
import numpy as np
from jax import lax
from jax.experimental import pallas as pl
from jax.experimental.pallas import tpu as pltpu


# ---------------------------------------------------------------------------
# db3 wavelet filters (pywt values). Analysis = correlation with the *flipped*
# decomposition filters, stride 2, zero pad 4 (what pytorch_wavelets' DWTForward
# (mode='zero') does). Synthesis (DWTInverse, zero mode) is written as an
# lhs-dilated correlation with the *unflipped* decomposition filters, pad 1 --
# mathematically identical to F.conv_transpose2d(stride=2, padding=L-2).
# ---------------------------------------------------------------------------
_DB3_DEC_LO = np.array([0.035226291882100656, -0.08544127388224149,
                        -0.13501102001039084, 0.4598775021193313,
                        0.8068915093133388, 0.3326705529509569], np.float32)
_DB3_DEC_HI = np.array([-0.3326705529509569, 0.8068915093133388,
                        -0.4598775021193313, -0.13501102001039084,
                        0.08544127388224149, 0.035226291882100656], np.float32)

# non-center taps of the 3x3 depthwise conv, fixed order shared by wrapper and kernel
_TAPS = tuple((ta, tb) for ta in range(3) for tb in range(3) if (ta, tb) != (1, 1))


def _gconv(x, k, strides, padding, lhs_dilation=(1, 1)):
    """Depthwise (grouped) NCHW conv, correlation semantics (like F.conv2d)."""
    return lax.conv_general_dilated(
        x, k, window_strides=strides, padding=padding,
        lhs_dilation=lhs_dilation,
        dimension_numbers=("NCHW", "OIHW", "NCHW"),
        feature_group_count=x.shape[1],
        precision=lax.Precision.HIGHEST)


def _dwt2_db3_zero(x):
    """J=1 2D db3 DWT, zero padding (pytorch_wavelets DWTForward equivalent)."""
    c = x.shape[1]
    a_lo = jnp.asarray(_DB3_DEC_LO[::-1].copy())
    a_hi = jnp.asarray(_DB3_DEC_HI[::-1].copy())
    kw_lo = jnp.tile(a_lo.reshape(1, 1, 1, 6), (c, 1, 1, 1))
    kw_hi = jnp.tile(a_hi.reshape(1, 1, 1, 6), (c, 1, 1, 1))
    kh_lo = jnp.tile(a_lo.reshape(1, 1, 6, 1), (c, 1, 1, 1))
    kh_hi = jnp.tile(a_hi.reshape(1, 1, 6, 1), (c, 1, 1, 1))
    lo_w = _gconv(x, kw_lo, (1, 2), ((0, 0), (4, 4)))
    hi_w = _gconv(x, kw_hi, (1, 2), ((0, 0), (4, 4)))
    ll = _gconv(lo_w, kh_lo, (2, 1), ((4, 4), (0, 0)))
    lh = _gconv(lo_w, kh_hi, (2, 1), ((4, 4), (0, 0)))   # yh[:, :, 0]
    hl = _gconv(hi_w, kh_lo, (2, 1), ((4, 4), (0, 0)))   # yh[:, :, 1]
    hh = _gconv(hi_w, kh_hi, (2, 1), ((4, 4), (0, 0)))   # yh[:, :, 2]
    return ll, lh, hl, hh


def _idwt2_db3_zero(ll, lh, hl, hh):
    """J=1 2D db3 inverse DWT, zero mode (pytorch_wavelets DWTInverse equivalent)."""
    c = ll.shape[1]
    s_lo = jnp.asarray(_DB3_DEC_LO)
    s_hi = jnp.asarray(_DB3_DEC_HI)
    kh_lo = jnp.tile(s_lo.reshape(1, 1, 6, 1), (c, 1, 1, 1))
    kh_hi = jnp.tile(s_hi.reshape(1, 1, 6, 1), (c, 1, 1, 1))
    kw_lo = jnp.tile(s_lo.reshape(1, 1, 1, 6), (c, 1, 1, 1))
    kw_hi = jnp.tile(s_hi.reshape(1, 1, 1, 6), (c, 1, 1, 1))
    up_h = dict(strides=(1, 1), padding=((1, 1), (0, 0)), lhs_dilation=(2, 1))
    up_w = dict(strides=(1, 1), padding=((0, 0), (1, 1)), lhs_dilation=(1, 2))
    lo = _gconv(ll, kh_lo, **up_h) + _gconv(lh, kh_hi, **up_h)
    hi = _gconv(hl, kh_lo, **up_h) + _gconv(hh, kh_hi, **up_h)
    return _gconv(lo, kw_lo, **up_w) + _gconv(hi, kw_hi, **up_w)


def _wcm_forward(x, w5, w7, w9):
    """WCM query branch: DWT -> depthwise 3x3 convs on subbands -> inverse DWT.
    (conv1 / conv_cat of the PyTorch WCM are defined but never used in forward.)"""
    # TODO(synk): the db3 wavelet lifting (strided / transposed grouped convs on tiny
    # subbands) has no clean Pallas tiling; it stays in XLA. Emitting q in bf16 (or fusing
    # it as a preceding Pallas stage) would further cut its HBM round trip if numerics allow.
    pad1 = ((1, 1), (1, 1))
    ll, lh, hl, hh = _dwt2_db3_zero(x)
    rec1 = _gconv(ll, w5, (1, 1), pad1)
    rec5 = _gconv(lh, w5, (1, 1), pad1)
    rec7 = _gconv(hl, w7, (1, 1), pad1)
    rec9 = _gconv(hh, w9, (1, 1), pad1)
    return _idwt2_db3_zero(rec1, rec5, rec7, rec9)


def _erf_poly(x):
    """erf via Abramowitz & Stegun 7.1.26 (|abs err| <= 1.5e-7): exact-GELU fidelity
    using only exp/mul/add/where, all of which have guaranteed Mosaic lowerings."""
    a1, a2, a3, a4, a5 = (0.254829592, -0.284496736, 1.421413741,
                          -1.453152027, 1.061405429)
    p = 0.3275911
    ax = jnp.abs(x)
    t = 1.0 / (1.0 + p * ax)
    poly = ((((a5 * t + a4) * t + a3) * t + a2) * t + a1) * t
    y = 1.0 - poly * jnp.exp(-(ax * ax))
    return jnp.where(x >= 0, y, -y)


# ---------------------------------------------------------------------------
# Fused Pallas kernel: LayerNorm -> fused gate/kv 1x1 -> roll-based depthwise 3x3 ->
# block-diagonal channel attention (with the externally supplied WCM query) -> gating
# -> single project_out matmul.
# ---------------------------------------------------------------------------
def _make_wsa_kernel(C, H, W, num_heads, nb):
    HW = H * W
    ch = C // num_heads
    inv_sqrt2 = 1.0 / math.sqrt(2.0)
    # One (C,C) block-diagonal attention matmul beats num_heads tiny (ch,ch) matmuls as
    # long as C fits a handful of MXU tiles and the head count is small.
    use_blockdiag = (C <= 256) and (num_heads <= 8)

    def kernel(x_ref, q_ref, lnw_ref, lnb_ref, win_ref, bin_ref, wdw_ref, bdw_ref,
               dwm_ref, maskt_ref, wp_ref, bp_ref, o_ref):
        f32 = jnp.float32
        lnw, lnb = lnw_ref[...], lnb_ref[...]            # (C,1) LayerNorm affine
        w_in, b_in = win_ref[...], bin_ref[...]          # (3C,C),(3C,1) fused gate||kv 1x1
        wdw, bdw = wdw_ref[...], bdw_ref[...]            # (2C,9),(2C,1) depthwise 3x3
        dwm = dwm_ref[...]                               # (8,HW) boundary masks (hoisted)
        maskt = maskt_ref[...]                           # (C,C) block-diag * temperature
        wp, bp = wp_ref[...], bp_ref[...]                # (C,C),(C,1) project_out

        def l2norm(t):   # F.normalize(dim=-1, eps=1e-12), full (C,HW) in one pass
            ss = jnp.sum(t * t, axis=-1, keepdims=True)
            return t * lax.rsqrt(jnp.maximum(ss, 1e-24))

        for s in range(nb):                              # static: nb samples per grid step
            x = x_ref[s]                                 # (C, HW)

            # ---- LayerNorm (WithBias): normalize over channels, per pixel (lane). ----
            mu = jnp.mean(x, axis=0, keepdims=True)
            var = jnp.mean((x - mu) ** 2, axis=0, keepdims=True)
            x1 = (x - mu) * lax.rsqrt(var + 1e-5)
            x1 = x1 * lnw + lnb

            # ---- gate + k/v 1x1 convs: one fused (3C,C)@(C,HW) MXU pass. ----
            gkv = jnp.dot(w_in, x1, preferred_element_type=f32) + b_in
            g = gkv[:C]
            g = 0.5 * g * (1.0 + _erf_poly(g * inv_sqrt2))        # exact (erf) GELU
            kv = gkv[C:]                                          # (2C, HW)

            # ---- depthwise 3x3, padding=1: 9 taps as XLU lane rotations of kv times
            #      precomputed row/column boundary masks (no padded-buffer materialization,
            #      masks hoisted to the host). ----
            acc = wdw[:, 4:5] * kv                                # center tap
            for mi, (ta, tb) in enumerate(_TAPS):
                sh = (ta - 1) * W + (tb - 1)                      # flattened pixel offset
                rolled = pltpu.roll(kv, shift=(-sh) % HW, axis=1)
                acc = acc + wdw[:, ta * 3 + tb:ta * 3 + tb + 1] * (rolled * dwm[mi:mi + 1, :])
            kvd = acc + bdw
            k = kvd[:C]                                           # (C, HW)
            v = kvd[C:]                                           # (C, HW)

            # ---- channel attention with the WCM query; l2norm hoisted out of heads. ----
            qn = l2norm(q_ref[s])
            kn = l2norm(k)

            if use_blockdiag:
                # one (C,C) q@k^T; block-diag mask folds the per-head temperature; ReLU;
                # one (C,C)@(C,HW) attn@v -> far better MXU fill than per-head K=ch matmuls.
                attn = lax.dot_general(qn, kn, (((1,), (1,)), ((), ())),
                                       preferred_element_type=f32)
                attn = jnp.maximum(attn * maskt, 0.0)
                og = jnp.dot(attn, v, preferred_element_type=f32) * g
            else:
                parts = []
                for h in range(num_heads):
                    lo, hi = h * ch, (h + 1) * ch
                    a = lax.dot_general(qn[lo:hi], kn[lo:hi], (((1,), (1,)), ((), ())),
                                        preferred_element_type=f32)
                    a = jnp.maximum(a * maskt[lo:hi, lo:hi], 0.0)
                    parts.append(jnp.dot(a, v[lo:hi], preferred_element_type=f32) * g[lo:hi])
                og = jnp.concatenate(parts, axis=0)

            # ---- project_out as ONE (C,C)@(C,HW) matmul (un-folded from the head loop). ----
            out = jnp.dot(wp, og, preferred_element_type=f32) + bp
            o_ref[s] = out.astype(o_ref.dtype)

    return kernel


def _pick_sample_block(n):
    """Samples per grid step: amortize per-step overhead, but keep >= 2 'parallel' grid
    steps whenever possible so both v7x TensorCores get work."""
    best = 1
    for nb in range(1, min(8, n) + 1):
        if n % nb == 0 and (n // nb >= 2 or n == 1):
            best = nb
    return best


def wsa_forward(x, params, *, num_heads):
    """WSA forward. x: (N, C, H, W) NCHW float32. Returns (N, C, H, W)."""
    N, C, H, W = x.shape
    assert C % num_heads == 0, "dim must be divisible by num_heads"
    assert H % 2 == 0 and W % 2 == 0, "even spatial sizes expected (db3 zero-mode DWT)"
    HW = H * W
    ch = C // num_heads
    f32 = jnp.float32

    # ---- q branch: WCM wavelet module (stays in XLA). ----
    q = _wcm_forward(x.astype(f32), params["conv5_w"].astype(f32),
                     params["conv7_w"].astype(f32), params["conv9_w"].astype(f32))

    def _col(v, rows):
        if v is None:
            return jnp.zeros((rows, 1), f32)
        return jnp.asarray(v, f32).reshape(rows, 1)

    ln_w = jnp.asarray(params["ln_w"], f32).reshape(C, 1)
    ln_b = jnp.asarray(params["ln_b"], f32).reshape(C, 1)

    # gate 1x1 and the k,v rows of the qkv 1x1 fused into a single weight (q rows unused).
    w_gate = jnp.asarray(params["gate_w"], f32).reshape(C, C)
    b_gate = _col(params["gate_b"], C)
    qkv_b = params.get("qkv_b")
    w_kv = jnp.asarray(params["qkv_w"], f32).reshape(3 * C, C)[C:]
    b_kv = _col(None if qkv_b is None else jnp.asarray(qkv_b)[C:], 2 * C)
    w_in = jnp.concatenate([w_gate, w_kv], axis=0)            # (3C, C)
    b_in = jnp.concatenate([b_gate, b_kv], axis=0)            # (3C, 1)

    dw_b = params.get("dw_b")
    w_dw = jnp.asarray(params["dw_w"], f32).reshape(3 * C, 9)[C:]   # (2C, 9), (kh,kw) minor
    b_dw = _col(None if dw_b is None else jnp.asarray(dw_b)[C:], 2 * C)

    w_proj = jnp.asarray(params["proj_w"], f32).reshape(C, C)
    b_proj = _col(params.get("proj_b"), C)

    # Block-diagonal head mask with the per-head temperature folded in: relu(qk * maskt)
    # equals relu(q_h @ k_h^T * temperature_h) inside each head block and exact zeros
    # across heads, so the single attn@v matmul reproduces the per-head math.
    temp = jnp.asarray(params["temperature"], f32).reshape(num_heads)
    head_id = np.arange(C) // ch
    blk = jnp.asarray((head_id[:, None] == head_id[None, :]).astype(np.float32))
    maskt = blk * temp[head_id][:, None]                      # (C, C)

    # Depthwise-3x3 boundary masks (hoisted to the host): one (1,HW) row per non-center tap.
    col = np.arange(HW) % W
    row = np.arange(HW) // W
    mrow = {-1: row > 0, 0: np.ones(HW, bool), 1: row < H - 1}
    mcol = {-1: col > 0, 0: np.ones(HW, bool), 1: col < W - 1}
    dwmask = jnp.asarray(np.stack(
        [(mrow[ta - 1] & mcol[tb - 1]).astype(np.float32) for ta, tb in _TAPS]))  # (8, HW)

    xf = x.astype(f32).reshape(N, C, HW)     # channels on sublanes, pixels on lanes
    qf = q.reshape(N, C, HW)

    nb = _pick_sample_block(N)
    kernel = _make_wsa_kernel(C, H, W, num_heads, nb)

    def sample_spec():
        return pl.BlockSpec((nb, C, HW), lambda n: (n, 0, 0))

    def bcast_spec(shape):
        return pl.BlockSpec(shape, lambda n: (0, 0))

    # NOTE: at these shapes each grid step uses well under 1 MiB of VMEM; for large C /
    # H*W (esp. on v7x's 64 MiB physical VMEM) the pixel axis should additionally be tiled
    # with an inner pltpu.emit_pipeline and vmem_limit_bytes raised accordingly.
    out = pl.pallas_call(
        kernel,
        out_shape=jax.ShapeDtypeStruct((N, C, HW), f32),
        grid_spec=pltpu.PrefetchScalarGridSpec(
            num_scalar_prefetch=0,
            grid=(N // nb,),
            in_specs=[
                sample_spec(),                                   # x
                sample_spec(),                                   # q (WCM output)
                bcast_spec((C, 1)), bcast_spec((C, 1)),          # LayerNorm weight / bias
                bcast_spec((3 * C, C)), bcast_spec((3 * C, 1)),  # fused gate||kv 1x1 w / b
                bcast_spec((2 * C, 9)), bcast_spec((2 * C, 1)),  # depthwise 3x3 w / b
                bcast_spec((8, HW)),                             # dwconv boundary masks
                bcast_spec((C, C)),                              # block-diag * temperature
                bcast_spec((C, C)), bcast_spec((C, 1)),          # project_out weight / bias
            ],
            out_specs=sample_spec(),
        ),
        compiler_params=pltpu.CompilerParams(
            dimension_semantics=("parallel",)),                  # v7x: grid steps across TCs
    )(xf, qf, ln_w, ln_b, w_in, b_in, w_dw, b_dw, dwmask, maskt, w_proj, b_proj)

    return out.reshape(N, C, H, W)   # lane-dense output: free reshape, no transpose


# ---------------------------------------------------------------------------
# Pure-JAX (XLA) reference of the same forward, used as an in-script self-check.
# ---------------------------------------------------------------------------
def wsa_reference(x, params, *, num_heads):
    N, C, H, W = x.shape
    HW = H * W
    hp = lax.Precision.HIGHEST
    x = x.astype(jnp.float32)

    mu = jnp.mean(x, axis=1, keepdims=True)
    var = jnp.mean((x - mu) ** 2, axis=1, keepdims=True)
    x1 = (x - mu) / jnp.sqrt(var + 1e-5)
    x1 = x1 * params["ln_w"].reshape(1, C, 1, 1) + params["ln_b"].reshape(1, C, 1, 1)

    g = jnp.einsum("oc,nchw->nohw", params["gate_w"].reshape(C, C), x1, precision=hp)
    g = g + params["gate_b"].reshape(1, C, 1, 1)
    g = 0.5 * g * (1.0 + jax.scipy.special.erf(g / math.sqrt(2.0)))

    qkv = jnp.einsum("oc,nchw->nohw", params["qkv_w"].reshape(3 * C, C), x1, precision=hp)
    if params.get("qkv_b") is not None:
        qkv = qkv + params["qkv_b"].reshape(1, 3 * C, 1, 1)
    qkv = _gconv(qkv, params["dw_w"], (1, 1), ((1, 1), (1, 1)))
    if params.get("dw_b") is not None:
        qkv = qkv + params["dw_b"].reshape(1, 3 * C, 1, 1)
    k = qkv[:, C:2 * C]
    v = qkv[:, 2 * C:]
    q = _wcm_forward(x, params["conv5_w"], params["conv7_w"], params["conv9_w"])

    ch = C // num_heads
    def heads(t):
        return t.reshape(N, num_heads, ch, HW)
    q, k, v = heads(q.reshape(N, C, HW)), heads(k.reshape(N, C, HW)), heads(v.reshape(N, C, HW))

    def l2n(t):
        return t / jnp.maximum(jnp.linalg.norm(t, axis=-1, keepdims=True), 1e-12)
    q, k = l2n(q), l2n(k)

    attn = jnp.einsum("nhcp,nhdp->nhcd", q, k, precision=hp)
    attn = jnp.maximum(attn * params["temperature"].reshape(1, num_heads, 1, 1), 0.0)
    out = jnp.einsum("nhcd,nhdp->nhcp", attn, v, precision=hp)
    out = out.reshape(N, C, H, W) * g
    out = jnp.einsum("oc,nchw->nohw", params["proj_w"].reshape(C, C), out, precision=hp)
    if params.get("proj_b") is not None:
        out = out + params["proj_b"].reshape(1, C, 1, 1)
    return out


if __name__ == "__main__":
    dim, num_heads = 8, 2          # dim % num_heads == 0
    N, H, W = 4, 16, 16            # H*W = 256 -> lane-dense; N=4 -> 2 samples/step, 2 steps
    bias = False                   # bias flag of WSA(..., bias, ...) for qkv/dwconv/project_out

    key = jax.random.PRNGKey(0)
    ks = jax.random.split(key, 9)

    def conv_w(k, shape):          # kaiming-uniform-style bound (nn.Conv2d default-ish)
        fan_in = shape[1] * shape[2] * shape[3]
        b = 1.0 / math.sqrt(fan_in)
        return jax.random.uniform(k, shape, minval=-b, maxval=b, dtype=jnp.float32)

    x = jax.random.normal(ks[0], (N, dim, H, W), dtype=jnp.float32)
    params = {
        "ln_w": jnp.ones((dim,), jnp.float32),
        "ln_b": jnp.zeros((dim,), jnp.float32),
        "gate_w": conv_w(ks[1], (dim, dim, 1, 1)),
        "gate_b": jax.random.uniform(ks[2], (dim,), minval=-1.0 / math.sqrt(dim),
                                     maxval=1.0 / math.sqrt(dim), dtype=jnp.float32),
        "qkv_w": conv_w(ks[3], (3 * dim, dim, 1, 1)),
        "qkv_b": None if not bias else jnp.zeros((3 * dim,), jnp.float32),
        "dw_w": conv_w(ks[4], (3 * dim, 1, 3, 3)),
        "dw_b": None if not bias else jnp.zeros((3 * dim,), jnp.float32),
        "proj_w": conv_w(ks[5], (dim, dim, 1, 1)),
        "proj_b": None if not bias else jnp.zeros((dim,), jnp.float32),
        "temperature": jnp.ones((num_heads, 1, 1), jnp.float32),
        "conv5_w": conv_w(ks[6], (dim, 1, 3, 3)),
        "conv7_w": conv_w(ks[7], (dim, 1, 3, 3)),
        "conv9_w": conv_w(ks[8], (dim, 1, 3, 3)),
    }

    y = jax.jit(functools.partial(wsa_forward, num_heads=num_heads))(x, params)
    jax.block_until_ready(y)
    assert y.shape == (N, dim, H, W), y.shape

    # Numerical self-check against a pure-JAX reference of the same math.
    y_ref = jax.jit(functools.partial(wsa_reference, num_heads=num_heads))(x, params)
    np.testing.assert_allclose(np.asarray(y), np.asarray(y_ref), atol=3e-3, rtol=3e-3)

    print("KERNEL_OK")
</pallas_src>

<mosaic_0001>
module attributes {stable_mosaic.version = 11 : i64} {
  func.func @kernel(%arg0: i32, %arg1: memref<2x8x256xf32, #tpu.memory_space<vmem>>, %arg2: memref<2x8x256xf32, #tpu.memory_space<vmem>>, %arg3: memref<8x1xf32, #tpu.memory_space<vmem>>, %arg4: memref<8x1xf32, #tpu.memory_space<vmem>>, %arg5: memref<24x8xf32, #tpu.memory_space<vmem>>, %arg6: memref<24x1xf32, #tpu.memory_space<vmem>>, %arg7: memref<16x9xf32, #tpu.memory_space<vmem>>, %arg8: memref<16x1xf32, #tpu.memory_space<vmem>>, %arg9: memref<8x256xf32, #tpu.memory_space<vmem>>, %arg10: memref<8x8xf32, #tpu.memory_space<vmem>>, %arg11: memref<8x8xf32, #tpu.memory_space<vmem>>, %arg12: memref<8x1xf32, #tpu.memory_space<vmem>>, %arg13: memref<2x8x256xf32, #tpu.memory_space<vmem>>) attributes {dimension_semantics = [#tpu.dimension_semantics<parallel>], iteration_bounds = array<i64: 2>, scalar_prefetch = 0 : i64, scratch_operands = 0 : i64, tpu.core_type = #tpu.core_type<tc>, window_params = [{transform_indices = @transform_0, window_bounds = array<i64: 2, 8, 256>}, {transform_indices = @transform_1, window_bounds = array<i64: 2, 8, 256>}, {pipeline_mode = #tpu.pipeline_mode<synchronous>, transform_indices = @transform_2, window_bounds = array<i64: 8, 1>}, {pipeline_mode = #tpu.pipeline_mode<synchronous>, transform_indices = @transform_3, window_bounds = array<i64: 8, 1>}, {pipeline_mode = #tpu.pipeline_mode<synchronous>, transform_indices = @transform_4, window_bounds = array<i64: 24, 8>}, {pipeline_mode = #tpu.pipeline_mode<synchronous>, transform_indices = @transform_5, window_bounds = array<i64: 24, 1>}, {pipeline_mode = #tpu.pipeline_mode<synchronous>, transform_indices = @transform_6, window_bounds = array<i64: 16, 9>}, {pipeline_mode = #tpu.pipeline_mode<synchronous>, transform_indices = @transform_7, window_bounds = array<i64: 16, 1>}, {pipeline_mode = #tpu.pipeline_mode<synchronous>, transform_indices = @transform_8, window_bounds = array<i64: 8, 256>}, {pipeline_mode = #tpu.pipeline_mode<synchronous>, transform_indices = @transform_9, window_bounds = array<i64: 8, 8>}, {pipeline_mode = #tpu.pipeline_mode<synchronous>, transform_indices = @transform_10, window_bounds = array<i64: 8, 8>}, {pipeline_mode = #tpu.pipeline_mode<synchronous>, transform_indices = @transform_11, window_bounds = array<i64: 8, 1>}, {transform_indices = @transform_12, window_bounds = array<i64: 2, 8, 256>}]} {
    %c0 = arith.constant 0 : index
    %c0_0 = arith.constant 0 : index
    %0 = vector.load %arg3[%c0, %c0_0] : memref<8x1xf32, #tpu.memory_space<vmem>>, vector<8x1xf32>
    %c0_1 = arith.constant 0 : index
    %c0_2 = arith.constant 0 : index
    %1 = vector.load %arg4[%c0_1, %c0_2] : memref<8x1xf32, #tpu.memory_space<vmem>>, vector<8x1xf32>
    %c0_3 = arith.constant 0 : index
    %c0_4 = arith.constant 0 : index
    %2 = vector.load %arg5[%c0_3, %c0_4] : memref<24x8xf32, #tpu.memory_space<vmem>>, vector<24x8xf32>
    %c0_5 = arith.constant 0 : index
    %c0_6 = arith.constant 0 : index
    %3 = vector.load %arg6[%c0_5, %c0_6] : memref<24x1xf32, #tpu.memory_space<vmem>>, vector<24x1xf32>
    %c0_7 = arith.constant 0 : index
    %c0_8 = arith.constant 0 : index
    %4 = vector.load %arg7[%c0_7, %c0_8] : memref<16x9xf32, #tpu.memory_space<vmem>>, vector<16x9xf32>
    %c0_9 = arith.constant 0 : index
    %c0_10 = arith.constant 0 : index
    %5 = vector.load %arg8[%c0_9, %c0_10] : memref<16x1xf32, #tpu.memory_space<vmem>>, vector<16x1xf32>
    %c0_11 = arith.constant 0 : index
    %c0_12 = arith.constant 0 : index
    %6 = vector.load %arg9[%c0_11, %c0_12] : memref<8x256xf32, #tpu.memory_space<vmem>>, vector<8x256xf32>
    %c0_13 = arith.constant 0 : index
    %c0_14 = arith.constant 0 : index
    %7 = vector.load %arg10[%c0_13, %c0_14] : memref<8x8xf32, #tpu.memory_space<vmem>>, vector<8x8xf32>
    %c0_15 = arith.constant 0 : index
    %c0_16 = arith.constant 0 : index
    %8 = vector.load %arg11[%c0_15, %c0_16] : memref<8x8xf32, #tpu.memory_space<vmem>>, vector<8x8xf32>
    %c0_17 = arith.constant 0 : index
    %c0_18 = arith.constant 0 : index
    %9 = vector.load %arg12[%c0_17, %c0_18] : memref<8x1xf32, #tpu.memory_space<vmem>>, vector<8x1xf32>
    %c0_19 = arith.constant 0 : index
    %c0_20 = arith.constant 0 : index
    %c0_21 = arith.constant 0 : index
    %10 = vector.load %arg1[%c0_19, %c0_20, %c0_21] : memref<2x8x256xf32, #tpu.memory_space<vmem>>, vector<1x8x256xf32>
    %11 = vector.shape_cast %10 : vector<1x8x256xf32> to vector<8x256xf32>
    %cst = arith.constant dense<0.000000e+00> : vector<256xf32>
    %12 = vector.multi_reduction <add>, %11, %cst [0] : vector<8x256xf32> to vector<256xf32>
    %13 = vector.shape_cast %12 : vector<256xf32> to vector<1x256xf32>
    %cst_22 = arith.constant 8.000000e+00 : f32
    %14 = vector.broadcast %cst_22 : f32 to vector<1x256xf32>
    %15 = arith.divf %13, %14 : vector<1x256xf32>
    %16 = vector.broadcast %15 : vector<1x256xf32> to vector<8x256xf32>
    %17 = arith.subf %11, %16 : vector<8x256xf32>
    %18 = arith.mulf %17, %17 : vector<8x256xf32>
    %cst_23 = arith.constant dense<0.000000e+00> : vector<256xf32>
    %19 = vector.multi_reduction <add>, %18, %cst_23 [0] : vector<8x256xf32> to vector<256xf32>
    %20 = vector.shape_cast %19 : vector<256xf32> to vector<1x256xf32>
    %cst_24 = arith.constant 8.000000e+00 : f32
    %21 = vector.broadcast %cst_24 : f32 to vector<1x256xf32>
    %22 = arith.divf %20, %21 : vector<1x256xf32>
    %23 = vector.broadcast %15 : vector<1x256xf32> to vector<8x256xf32>
    %24 = arith.subf %11, %23 : vector<8x256xf32>
    %cst_25 = arith.constant 9.99999974E-6 : f32
    %25 = vector.broadcast %cst_25 : f32 to vector<1x256xf32>
    %26 = arith.addf %22, %25 : vector<1x256xf32>
    %27 = math.rsqrt %26 : vector<1x256xf32>
    %28 = vector.broadcast %27 : vector<1x256xf32> to vector<8x256xf32>
    %29 = arith.mulf %24, %28 : vector<8x256xf32>
    %30 = vector.broadcast %0 : vector<8x1xf32> to vector<8x256xf32>
    %31 = arith.mulf %29, %30 : vector<8x256xf32>
    %32 = vector.broadcast %1 : vector<8x1xf32> to vector<8x256xf32>
    %33 = arith.addf %31, %32 : vector<8x256xf32>
    %cst_26 = arith.constant dense<0.000000e+00> : vector<24x256xf32>
    %34 = tpu.matmul %2, %33, %cst_26 {dimension_numbers = #tpu.dot_dimension_numbers<[1], [0], [0], [1], [0, 0, 1, 1], [], []>} : vector<24x8xf32>, vector<8x256xf32>, vector<24x256xf32> -> vector<24x256xf32>
    %35 = vector.broadcast %3 : vector<24x1xf32> to vector<24x256xf32>
    %36 = arith.addf %34, %35 : vector<24x256xf32>
    %37 = vector.extract_strided_slice %36 {offsets = [0, 0], sizes = [8, 256], strides = [1, 1]} : vector<24x256xf32> to vector<8x256xf32>
    %cst_27 = arith.constant 5.000000e-01 : f32
    %38 = vector.broadcast %cst_27 : f32 to vector<8x256xf32>
    %39 = arith.mulf %38, %37 : vector<8x256xf32>
    %cst_28 = arith.constant 0.707106769 : f32
    %40 = vector.broadcast %cst_28 : f32 to vector<8x256xf32>
    %41 = arith.mulf %37, %40 : vector<8x256xf32>
    %42 = math.absf %41 : vector<8x256xf32>
    %cst_29 = arith.constant 0.327591091 : f32
    %43 = vector.broadcast %cst_29 : f32 to vector<8x256xf32>
    %44 = arith.mulf %43, %42 : vector<8x256xf32>
    %cst_30 = arith.constant 1.000000e+00 : f32
    %45 = vector.broadcast %cst_30 : f32 to vector<8x256xf32>
    %46 = arith.addf %45, %44 : vector<8x256xf32>
    %cst_31 = arith.constant 1.000000e+00 : f32
    %47 = vector.broadcast %cst_31 : f32 to vector<8x256xf32>
    %48 = arith.divf %47, %46 : vector<8x256xf32>
    %cst_32 = arith.constant 1.06140542 : f32
    %49 = vector.broadcast %cst_32 : f32 to vector<8x256xf32>
    %50 = arith.mulf %49, %48 : vector<8x256xf32>
    %cst_33 = arith.constant -1.45315206 : f32
    %51 = vector.broadcast %cst_33 : f32 to vector<8x256xf32>
    %52 = arith.addf %50, %51 : vector<8x256xf32>
    %53 = arith.mulf %52, %48 : vector<8x256xf32>
    %cst_34 = arith.constant 1.42141378 : f32
    %54 = vector.broadcast %cst_34 : f32 to vector<8x256xf32>
    %55 = arith.addf %53, %54 : vector<8x256xf32>
    %56 = arith.mulf %55, %48 : vector<8x256xf32>
    %cst_35 = arith.constant -0.284496725 : f32
    %57 = vector.broadcast %cst_35 : f32 to vector<8x256xf32>
    %58 = arith.addf %56, %57 : vector<8x256xf32>
    %59 = arith.mulf %58, %48 : vector<8x256xf32>
    %cst_36 = arith.constant 0.254829586 : f32
    %60 = vector.broadcast %cst_36 : f32 to vector<8x256xf32>
    %61 = arith.addf %59, %60 : vector<8x256xf32>
    %62 = arith.mulf %61, %48 : vector<8x256xf32>
    %63 = arith.mulf %42, %42 : vector<8x256xf32>
    %cst_37 = arith.constant 0.000000e+00 : f32
    %64 = vector.broadcast %cst_37 : f32 to vector<8x256xf32>
    %65 = arith.subf %64, %63 : vector<8x256xf32>
    %66 = math.exp %65 : vector<8x256xf32>
    %67 = arith.mulf %62, %66 : vector<8x256xf32>
    %cst_38 = arith.constant 1.000000e+00 : f32
    %68 = vector.broadcast %cst_38 : f32 to vector<8x256xf32>
    %69 = arith.subf %68, %67 : vector<8x256xf32>
    %cst_39 = arith.constant 0.000000e+00 : f32
    %70 = vector.broadcast %cst_39 : f32 to vector<8x256xf32>
    %71 = arith.cmpf oge, %41, %70 : vector<8x256xf32>
    %cst_40 = arith.constant 0.000000e+00 : f32
    %72 = vector.broadcast %cst_40 : f32 to vector<8x256xf32>
    %73 = arith.subf %72, %69 : vector<8x256xf32>
    %74 = arith.select %71, %69, %73 : vector<8x256xi1>, vector<8x256xf32>
    %cst_41 = arith.constant 1.000000e+00 : f32
    %75 = vector.broadcast %cst_41 : f32 to vector<8x256xf32>
    %76 = arith.addf %75, %74 : vector<8x256xf32>
    %77 = arith.mulf %39, %76 : vector<8x256xf32>
    %78 = vector.extract_strided_slice %36 {offsets = [8, 0], sizes = [16, 256], strides = [1, 1]} : vector<24x256xf32> to vector<16x256xf32>
    %79 = vector.extract_strided_slice %4 {offsets = [0, 4], sizes = [16, 1], strides = [1, 1]} : vector<16x9xf32> to vector<16x1xf32>
    %80 = vector.broadcast %79 : vector<16x1xf32> to vector<16x256xf32>
    %81 = arith.mulf %80, %78 : vector<16x256xf32>
    %c17_i32 = arith.constant 17 : i32
    %82 = tpu.dynamic_rotate %78 by %c17_i32 dim 1 : vector<16x256xf32>, i32 -> vector<16x256xf32>
    %83 = vector.extract_strided_slice %4 {offsets = [0, 0], sizes = [16, 1], strides = [1, 1]} : vector<16x9xf32> to vector<16x1xf32>
    %84 = vector.extract_strided_slice %6 {offsets = [0, 0], sizes = [1, 256], strides = [1, 1]} : vector<8x256xf32> to vector<1x256xf32>
    %85 = vector.broadcast %84 : vector<1x256xf32> to vector<16x256xf32>
    %86 = arith.mulf %82, %85 : vector<16x256xf32>
    %87 = vector.broadcast %83 : vector<16x1xf32> to vector<16x256xf32>
    %88 = arith.mulf %87, %86 : vector<16x256xf32>
    %89 = arith.addf %81, %88 : vector<16x256xf32>
    %c16_i32 = arith.constant 16 : i32
    %90 = tpu.dynamic_rotate %78 by %c16_i32 dim 1 : vector<16x256xf32>, i32 -> vector<16x256xf32>
    %91 = vector.extract_strided_slice %4 {offsets = [0, 1], sizes = [16, 1], strides = [1, 1]} : vector<16x9xf32> to vector<16x1xf32>
    %92 = vector.extract_strided_slice %6 {offsets = [1, 0], sizes = [1, 256], strides = [1, 1]} : vector<8x256xf32> to vector<1x256xf32>
    %93 = vector.broadcast %92 : vector<1x256xf32> to vector<16x256xf32>
    %94 = arith.mulf %90, %93 : vector<16x256xf32>
    %95 = vector.broadcast %91 : vector<16x1xf32> to vector<16x256xf32>
    %96 = arith.mulf %95, %94 : vector<16x256xf32>
    %97 = arith.addf %89, %96 : vector<16x256xf32>
    %c15_i32 = arith.constant 15 : i32
    %98 = tpu.dynamic_rotate %78 by %c15_i32 dim 1 : vector<16x256xf32>, i32 -> vector<16x256xf32>
    %99 = vector.extract_strided_slice %4 {offsets = [0, 2], sizes = [16, 1], strides = [1, 1]} : vector<16x9xf32> to vector<16x1xf32>
    %100 = vector.extract_strided_slice %6 {offsets = [2, 0], sizes = [1, 256], strides = [1, 1]} : vector<8x256xf32> to vector<1x256xf32>
    %101 = vector.broadcast %100 : vector<1x256xf32> to vector<16x256xf32>
    %102 = arith.mulf %98, %101 : vector<16x256xf32>
    %103 = vector.broadcast %99 : vector<16x1xf32> to vector<16x256xf32>
    %104 = arith.mulf %103, %102 : vector<16x256xf32>
    %105 = arith.addf %97, %104 : vector<16x256xf32>
    %c1_i32 = arith.constant 1 : i32
    %106 = tpu.dynamic_rotate %78 by %c1_i32 dim 1 : vector<16x256xf32>, i32 -> vector<16x256xf32>
    %107 = vector.extract_strided_slice %4 {offsets = [0, 3], sizes = [16, 1], strides = [1, 1]} : vector<16x9xf32> to vector<16x1xf32>
    %108 = vector.extract_strided_slice %6 {offsets = [3, 0], sizes = [1, 256], strides = [1, 1]} : vector<8x256xf32> to vector<1x256xf32>
    %109 = vector.broadcast %108 : vector<1x256xf32> to vector<16x256xf32>
    %110 = arith.mulf %106, %109 : vector<16x256xf32>
    %111 = vector.broadcast %107 : vector<16x1xf32> to vector<16x256xf32>
    %112 = arith.mulf %111, %110 : vector<16x256xf32>
    %113 = arith.addf %105, %112 : vector<16x256xf32>
    %c255_i32 = arith.constant 255 : i32
    %114 = tpu.dynamic_rotate %78 by %c255_i32 dim 1 : vector<16x256xf32>, i32 -> vector<16x256xf32>
    %115 = vector.extract_strided_slice %4 {offsets = [0, 5], sizes = [16, 1], strides = [1, 1]} : vector<16x9xf32> to vector<16x1xf32>
    %116 = vector.extract_strided_slice %6 {offsets = [4, 0], sizes = [1, 256], strides = [1, 1]} : vector<8x256xf32> to vector<1x256xf32>
    %117 = vector.broadcast %116 : vector<1x256xf32> to vector<16x256xf32>
    %118 = arith.mulf %114, %117 : vector<16x256xf32>
    %119 = vector.broadcast %115 : vector<16x1xf32> to vector<16x256xf32>
    %120 = arith.mulf %119, %118 : vector<16x256xf32>
    %121 = arith.addf %113, %120 : vector<16x256xf32>
    %c241_i32 = arith.constant 241 : i32
    %122 = tpu.dynamic_rotate %78 by %c241_i32 dim 1 : vector<16x256xf32>, i32 -> vector<16x256xf32>
    %123 = vector.extract_strided_slice %4 {offsets = [0, 6], sizes = [16, 1], strides = [1, 1]} : vector<16x9xf32> to vector<16x1xf32>
    %124 = vector.extract_strided_slice %6 {offsets = [5, 0], sizes = [1, 256], strides = [1, 1]} : vector<8x256xf32> to vector<1x256xf32>
    %125 = vector.broadcast %124 : vector<1x256xf32> to vector<16x256xf32>
    %126 = arith.mulf %122, %125 : vector<16x256xf32>
    %127 = vector.broadcast %123 : vector<16x1xf32> to vector<16x256xf32>
    %128 = arith.mulf %127, %126 : vector<16x256xf32>
    %129 = arith.addf %121, %128 : vector<16x256xf32>
    %c240_i32 = arith.constant 240 : i32
    %130 = tpu.dynamic_rotate %78 by %c240_i32 dim 1 : vector<16x256xf32>, i32 -> vector<16x256xf32>
    %131 = vector.extract_strided_slice %4 {offsets = [0, 7], sizes = [16, 1], strides = [1, 1]} : vector<16x9xf32> to vector<16x1xf32>
    %132 = vector.extract_strided_slice %6 {offsets = [6, 0], sizes = [1, 256], strides = [1, 1]} : vector<8x256xf32> to vector<1x256xf32>
    %133 = vector.broadcast %132 : vector<1x256xf32> to vector<16x256xf32>
    %134 = arith.mulf %130, %133 : vector<16x256xf32>
    %135 = vector.broadcast %131 : vector<16x1xf32> to vector<16x256xf32>
    %136 = arith.mulf %135, %134 : vector<16x256xf32>
    %137 = arith.addf %129, %136 : vector<16x256xf32>
    %c239_i32 = arith.constant 239 : i32
    %138 = tpu.dynamic_rotate %78 by %c239_i32 dim 1 : vector<16x256xf32>, i32 -> vector<16x256xf32>
    %139 = vector.extract_strided_slice %4 {offsets = [0, 8], sizes = [16, 1], strides = [1, 1]} : vector<16x9xf32> to vector<16x1xf32>
    %140 = vector.extract_strided_slice %6 {offsets = [7, 0], sizes = [1, 256], strides = [1, 1]} : vector<8x256xf32> to vector<1x256xf32>
    %141 = vector.broadcast %140 : vector<1x256xf32> to vector<16x256xf32>
    %142 = arith.mulf %138, %141 : vector<16x256xf32>
    %143 = vector.broadcast %139 : vector<16x1xf32> to vector<16x256xf32>
    %144 = arith.mulf %143, %142 : vector<16x256xf32>
    %145 = arith.addf %137, %144 : vector<16x256xf32>
    %146 = vector.broadcast %5 : vector<16x1xf32> to vector<16x256xf32>
    %147 = arith.addf %145, %146 : vector<16x256xf32>
    %148 = vector.extract_strided_slice %147 {offsets = [0, 0], sizes = [8, 256], strides = [1, 1]} : vector<16x256xf32> to vector<8x256xf32>
    %149 = vector.extract_strided_slice %147 {offsets = [8, 0], sizes = [8, 256], strides = [1, 1]} : vector<16x256xf32> to vector<8x256xf32>
    %c0_42 = arith.constant 0 : index
    %c0_43 = arith.constant 0 : index
    %c0_44 = arith.constant 0 : index
    %150 = vector.load %arg2[%c0_42, %c0_43, %c0_44] : memref<2x8x256xf32, #tpu.memory_space<vmem>>, vector<1x8x256xf32>
    %151 = vector.shape_cast %150 : vector<1x8x256xf32> to vector<8x256xf32>
    %152 = arith.mulf %151, %151 : vector<8x256xf32>
    %cst_45 = arith.constant dense<0.000000e+00> : vector<8xf32>
    %153 = vector.multi_reduction <add>, %152, %cst_45 [1] : vector<8x256xf32> to vector<8xf32>
    %154 = vector.shape_cast %153 : vector<8xf32> to vector<8x1xf32>
    %cst_46 = arith.constant 1.000000e-24 : f32
    %155 = vector.broadcast %cst_46 : f32 to vector<8x1xf32>
    %156 = arith.maximumf %154, %155 : vector<8x1xf32>
    %157 = math.rsqrt %156 : vector<8x1xf32>
    %158 = vector.broadcast %157 : vector<8x1xf32> to vector<8x256xf32>
    %159 = arith.mulf %151, %158 : vector<8x256xf32>
    %160 = arith.mulf %148, %148 : vector<8x256xf32>
    %cst_47 = arith.constant dense<0.000000e+00> : vector<8xf32>
    %161 = vector.multi_reduction <add>, %160, %cst_47 [1] : vector<8x256xf32> to vector<8xf32>
    %162 = vector.shape_cast %161 : vector<8xf32> to vector<8x1xf32>
    %cst_48 = arith.constant 1.000000e-24 : f32
    %163 = vector.broadcast %cst_48 : f32 to vector<8x1xf32>
    %164 = arith.maximumf %162, %163 : vector<8x1xf32>
    %165 = math.rsqrt %164 : vector<8x1xf32>
    %166 = vector.broadcast %165 : vector<8x1xf32> to vector<8x256xf32>
    %167 = arith.mulf %148, %166 : vector<8x256xf32>
    %cst_49 = arith.constant dense<0.000000e+00> : vector<8x8xf32>
    %168 = tpu.matmul %159, %167, %cst_49 {dimension_numbers = #tpu.dot_dimension_numbers<[1], [1], [0], [0], [0, 0, 1, 0], [], []>} : vector<8x256xf32>, vector<8x256xf32>, vector<8x8xf32> -> vector<8x8xf32>
    %169 = arith.mulf %168, %7 : vector<8x8xf32>
    %cst_50 = arith.constant 0.000000e+00 : f32
    %170 = vector.broadcast %cst_50 : f32 to vector<8x8xf32>
    %171 = arith.maximumf %169, %170 : vector<8x8xf32>
    %cst_51 = arith.constant dense<0.000000e+00> : vector<8x256xf32>
    %172 = tpu.matmul %171, %149, %cst_51 {dimension_numbers = #tpu.dot_dimension_numbers<[1], [0], [0], [1], [0, 0, 1, 1], [], []>} : vector<8x8xf32>, vector<8x256xf32>, vector<8x256xf32> -> vector<8x256xf32>
    %173 = arith.mulf %172, %77 : vector<8x256xf32>
    %cst_52 = arith.constant dense<0.000000e+00> : vector<8x256xf32>
    %174 = tpu.matmul %8, %173, %cst_52 {dimension_numbers = #tpu.dot_dimension_numbers<[1], [0], [0], [1], [0, 0, 1, 1], [], []>} : vector<8x8xf32>, vector<8x256xf32>, vector<8x256xf32> -> vector<8x256xf32>
    %175 = vector.broadcast %9 : vector<8x1xf32> to vector<8x256xf32>
    %176 = arith.addf %174, %175 : vector<8x256xf32>
    %c0_53 = arith.constant 0 : index
    %c0_54 = arith.constant 0 : index
    %c0_55 = arith.constant 0 : index
    %177 = vector.load %arg13[%c0_53, %c0_54, %c0_55] : memref<2x8x256xf32, #tpu.memory_space<vmem>>, vector<1x8x256xf32>
    %178 = vector.shape_cast %177 : vector<1x8x256xf32> to vector<8x256xf32>
    %179 = vector.shape_cast %176 : vector<8x256xf32> to vector<1x8x256xf32>
    tpu.vector_store %arg13[%c0_53, %c0_54, %c0_55], %179 {strides = array<i32>} : memref<2x8x256xf32, #tpu.memory_space<vmem>>, vector<1x8x256xf32>,
    %c1 = arith.constant 1 : index
    %c0_56 = arith.constant 0 : index
    %c0_57 = arith.constant 0 : index
    %180 = vector.load %arg1[%c1, %c0_56, %c0_57] : memref<2x8x256xf32, #tpu.memory_space<vmem>>, vector<1x8x256xf32>
    %181 = vector.shape_cast %180 : vector<1x8x256xf32> to vector<8x256xf32>
    %cst_58 = arith.constant dense<0.000000e+00> : vector<256xf32>
    %182 = vector.multi_reduction <add>, %181, %cst_58 [0] : vector<8x256xf32> to vector<256xf32>
    %183 = vector.shape_cast %182 : vector<256xf32> to vector<1x256xf32>
    %cst_59 = arith.constant 8.000000e+00 : f32
    %184 = vector.broadcast %cst_59 : f32 to vector<1x256xf32>
    %185 = arith.divf %183, %184 : vector<1x256xf32>
    %186 = vector.broadcast %185 : vector<1x256xf32> to vector<8x256xf32>
    %187 = arith.subf %181, %186 : vector<8x256xf32>
    %188 = arith.mulf %187, %187 : vector<8x256xf32>
    %cst_60 = arith.constant dense<0.000000e+00> : vector<256xf32>
    %189 = vector.multi_reduction <add>, %188, %cst_60 [0] : vector<8x256xf32> to vector<256xf32>
    %190 = vector.shape_cast %189 : vector<256xf32> to vector<1x256xf32>
    %cst_61 = arith.constant 8.000000e+00 : f32
    %191 = vector.broadcast %cst_61 : f32 to vector<1x256xf32>
    %192 = arith.divf %190, %191 : vector<1x256xf32>
    %193 = vector.broadcast %185 : vector<1x256xf32> to vector<8x256xf32>
    %194 = arith.subf %181, %193 : vector<8x256xf32>
    %cst_62 = arith.constant 9.99999974E-6 : f32
    %195 = vector.broadcast %cst_62 : f32 to vector<1x256xf32>
    %196 = arith.addf %192, %195 : vector<1x256xf32>
    %197 = math.rsqrt %196 : vector<1x256xf32>
    %198 = vector.broadcast %197 : vector<1x256xf32> to vector<8x256xf32>
    %199 = arith.mulf %194, %198 : vector<8x256xf32>
    %200 = vector.broadcast %0 : vector<8x1xf32> to vector<8x256xf32>
    %201 = arith.mulf %199, %200 : vector<8x256xf32>
    %202 = vector.broadcast %1 : vector<8x1xf32> to vector<8x256xf32>
    %203 = arith.addf %201, %202 : vector<8x256xf32>
    %cst_63 = arith.constant dense<0.000000e+00> : vector<24x256xf32>
    %204 = tpu.matmul %2, %203, %cst_63 {dimension_numbers = #tpu.dot_dimension_numbers<[1], [0], [0], [1], [0, 0, 1, 1], [], []>} : vector<24x8xf32>, vector<8x256xf32>, vector<24x256xf32> -> vector<24x256xf32>
    %205 = vector.broadcast %3 : vector<24x1xf32> to vector<24x256xf32>
    %206 = arith.addf %204, %205 : vector<24x256xf32>
    %207 = vector.extract_strided_slice %206 {offsets = [0, 0], sizes = [8, 256], strides = [1, 1]} : vector<24x256xf32> to vector<8x256xf32>
    %cst_64 = arith.constant 5.000000e-01 : f32
    %208 = vector.broadcast %cst_64 : f32 to vector<8x256xf32>
    %209 = arith.mulf %208, %207 : vector<8x256xf32>
    %cst_65 = arith.constant 0.707106769 : f32
    %210 = vector.broadcast %cst_65 : f32 to vector<8x256xf32>
    %211 = arith.mulf %207, %210 : vector<8x256xf32>
    %212 = math.absf %211 : vector<8x256xf32>
    %cst_66 = arith.constant 0.327591091 : f32
    %213 = vector.broadcast %cst_66 : f32 to vector<8x256xf32>
    %214 = arith.mulf %213, %212 : vector<8x256xf32>
    %cst_67 = arith.constant 1.000000e+00 : f32
    %215 = vector.broadcast %cst_67 : f32 to vector<8x256xf32>
    %216 = arith.addf %215, %214 : vector<8x256xf32>
    %cst_68 = arith.constant 1.000000e+00 : f32
    %217 = vector.broadcast %cst_68 : f32 to vector<8x256xf32>
    %218 = arith.divf %217, %216 : vector<8x256xf32>
    %cst_69 = arith.constant 1.06140542 : f32
    %219 = vector.broadcast %cst_69 : f32 to vector<8x256xf32>
    %220 = arith.mulf %219, %218 : vector<8x256xf32>
    %cst_70 = arith.constant -1.45315206 : f32
    %221 = vector.broadcast %cst_70 : f32 to vector<8x256xf32>
    %222 = arith.addf %220, %221 : vector<8x256xf32>
    %223 = arith.mulf %222, %218 : vector<8x256xf32>
    %cst_71 = arith.constant 1.42141378 : f32
    %224 = vector.broadcast %cst_71 : f32 to vector<8x256xf32>
    %225 = arith.addf %223, %224 : vector<8x256xf32>
    %226 = arith.mulf %225, %218 : vector<8x256xf32>
    %cst_72 = arith.constant -0.284496725 : f32
    %227 = vector.broadcast %cst_72 : f32 to vector<8x256xf32>
    %228 = arith.addf %226, %227 : vector<8x256xf32>
    %229 = arith.mulf %228, %218 : vector<8x256xf32>
    %cst_73 = arith.constant 0.254829586 : f32
    %230 = vector.broadcast %cst_73 : f32 to vector<8x256xf32>
    %231 = arith.addf %229, %230 : vector<8x256xf32>
    %232 = arith.mulf %231, %218 : vector<8x256xf32>
    %233 = arith.mulf %212, %212 : vector<8x256xf32>
    %cst_74 = arith.constant 0.000000e+00 : f32
    %234 = vector.broadcast %cst_74 : f32 to vector<8x256xf32>
    %235 = arith.subf %234, %233 : vector<8x256xf32>
    %236 = math.exp %235 : vector<8x256xf32>
    %237 = arith.mulf %232, %236 : vector<8x256xf32>
    %cst_75 = arith.constant 1.000000e+00 : f32
    %238 = vector.broadcast %cst_75 : f32 to vector<8x256xf32>
    %239 = arith.subf %238, %237 : vector<8x256xf32>
    %cst_76 = arith.constant 0.000000e+00 : f32
    %240 = vector.broadcast %cst_76 : f32 to vector<8x256xf32>
    %241 = arith.cmpf oge, %211, %240 : vector<8x256xf32>
    %cst_77 = arith.constant 0.000000e+00 : f32
    %242 = vector.broadcast %cst_77 : f32 to vector<8x256xf32>
    %243 = arith.subf %242, %239 : vector<8x256xf32>
    %244 = arith.select %241, %239, %243 : vector<8x256xi1>, vector<8x256xf32>
    %cst_78 = arith.constant 1.000000e+00 : f32
    %245 = vector.broadcast %cst_78 : f32 to vector<8x256xf32>
    %246 = arith.addf %245, %244 : vector<8x256xf32>
    %247 = arith.mulf %209, %246 : vector<8x256xf32>
    %248 = vector.extract_strided_slice %206 {offsets = [8, 0], sizes = [16, 256], strides = [1, 1]} : vector<24x256xf32> to vector<16x256xf32>
    %249 = vector.extract_strided_slice %4 {offsets = [0, 4], sizes = [16, 1], strides = [1, 1]} : vector<16x9xf32> to vector<16x1xf32>
    %250 = vector.broadcast %249 : vector<16x1xf32> to vector<16x256xf32>
    %251 = arith.mulf %250, %248 : vector<16x256xf32>
    %c17_i32_79 = arith.constant 17 : i32
    %252 = tpu.dynamic_rotate %248 by %c17_i32_79 dim 1 : vector<16x256xf32>, i32 -> vector<16x256xf32>
    %253 = vector.extract_strided_slice %4 {offsets = [0, 0], sizes = [16, 1], strides = [1, 1]} : vector<16x9xf32> to vector<16x1xf32>
    %254 = vector.extract_strided_slice %6 {offsets = [0, 0], sizes = [1, 256], strides = [1, 1]} : vector<8x256xf32> to vector<1x256xf32>
    %255 = vector.broadcast %254 : vector<1x256xf32> to vector<16x256xf32>
    %256 = arith.mulf %252, %255 : vector<16x256xf32>
    %257 = vector.broadcast %253 : vector<16x1xf32> to vector<16x256xf32>
    %258 = arith.mulf %257, %256 : vector<16x256xf32>
    %259 = arith.addf %251, %258 : vector<16x256xf32>
    %c16_i32_80 = arith.constant 16 : i32
    %260 = tpu.dynamic_rotate %248 by %c16_i32_80 dim 1 : vector<16x256xf32>, i32 -> vector<16x256xf32>
    %261 = vector.extract_strided_slice %4 {offsets = [0, 1], sizes = [16, 1], strides = [1, 1]} : vector<16x9xf32> to vector<16x1xf32>
    %262 = vector.extract_strided_slice %6 {offsets = [1, 0], sizes = [1, 256], strides = [1, 1]} : vector<8x256xf32> to vector<1x256xf32>
    %263 = vector.broadcast %262 : vector<1x256xf32> to vector<16x256xf32>
    %264 = arith.mulf %260, %263 : vector<16x256xf32>
    %265 = vector.broadcast %261 : vector<16x1xf32> to vector<16x256xf32>
    %266 = arith.mulf %265, %264 : vector<16x256xf32>
    %267 = arith.addf %259, %266 : vector<16x256xf32>
    %c15_i32_81 = arith.constant 15 : i32
    %268 = tpu.dynamic_rotate %248 by %c15_i32_81 dim 1 : vector<16x256xf32>, i32 -> vector<16x256xf32>
    %269 = vector.extract_strided_slice %4 {offsets = [0, 2], sizes = [16, 1], strides = [1, 1]} : vector<16x9xf32> to vector<16x1xf32>
    %270 = vector.extract_strided_slice %6 {offsets = [2, 0], sizes = [1, 256], strides = [1, 1]} : vector<8x256xf32> to vector<1x256xf32>
    %271 = vector.broadcast %270 : vector<1x256xf32> to vector<16x256xf32>
    %272 = arith.mulf %268, %271 : vector<16x256xf32>
    %273 = vector.broadcast %269 : vector<16x1xf32> to vector<16x256xf32>
    %274 = arith.mulf %273, %272 : vector<16x256xf32>
    %275 = arith.addf %267, %274 : vector<16x256xf32>
    %c1_i32_82 = arith.constant 1 : i32
    %276 = tpu.dynamic_rotate %248 by %c1_i32_82 dim 1 : vector<16x256xf32>, i32 -> vector<16x256xf32>
    %277 = vector.extract_strided_slice %4 {offsets = [0, 3], sizes = [16, 1], strides = [1, 1]} : vector<16x9xf32> to vector<16x1xf32>
    %278 = vector.extract_strided_slice %6 {offsets = [3, 0], sizes = [1, 256], strides = [1, 1]} : vector<8x256xf32> to vector<1x256xf32>
    %279 = vector.broadcast %278 : vector<1x256xf32> to vector<16x256xf32>
    %280 = arith.mulf %276, %279 : vector<16x256xf32>
    %281 = vector.broadcast %277 : vector<16x1xf32> to vector<16x256xf32>
    %282 = arith.mulf %281, %280 : vector<16x256xf32>
    %283 = arith.addf %275, %282 : vector<16x256xf32>
    %c255_i32_83 = arith.constant 255 : i32
    %284 = tpu.dynamic_rotate %248 by %c255_i32_83 dim 1 : vector<16x256xf32>, i32 -> vector<16x256xf32>
    %285 = vector.extract_strided_slice %4 {offsets = [0, 5], sizes = [16, 1], strides = [1, 1]} : vector<16x9xf32> to vector<16x1xf32>
    %286 = vector.extract_strided_slice %6 {offsets = [4, 0], sizes = [1, 256], strides = [1, 1]} : vector<8x256xf32> to vector<1x256xf32>
    %287 = vector.broadcast %286 : vector<1x256xf32> to vector<16x256xf32>
    %288 = arith.mulf %284, %287 : vector<16x256xf32>
    %289 = vector.broadcast %285 : vector<16x1xf32> to vector<16x256xf32>
    %290 = arith.mulf %289, %288 : vector<16x256xf32>
    %291 = arith.addf %283, %290 : vector<16x256xf32>
    %c241_i32_84 = arith.constant 241 : i32
    %292 = tpu.dynamic_rotate %248 by %c241_i32_84 dim 1 : vector<16x256xf32>, i32 -> vector<16x256xf32>
    %293 = vector.extract_strided_slice %4 {offsets = [0, 6], sizes = [16, 1], strides = [1, 1]} : vector<16x9xf32> to vector<16x1xf32>
    %294 = vector.extract_strided_slice %6 {offsets = [5, 0], sizes = [1, 256], strides = [1, 1]} : vector<8x256xf32> to vector<1x256xf32>
    %295 = vector.broadcast %294 : vector<1x256xf32> to vector<16x256xf32>
    %296 = arith.mulf %292, %295 : vector<16x256xf32>
    %297 = vector.broadcast %293 : vector<16x1xf32> to vector<16x256xf32>
    %298 = arith.mulf %297, %296 : vector<16x256xf32>
    %299 = arith.addf %291, %298 : vector<16x256xf32>
    %c240_i32_85 = arith.constant 240 : i32
    %300 = tpu.dynamic_rotate %248 by %c240_i32_85 dim 1 : vector<16x256xf32>, i32 -> vector<16x256xf32>
    %301 = vector.extract_strided_slice %4 {offsets = [0, 7], sizes = [16, 1], strides = [1, 1]} : vector<16x9xf32> to vector<16x1xf32>
    %302 = vector.extract_strided_slice %6 {offsets = [6, 0], sizes = [1, 256], strides = [1, 1]} : vector<8x256xf32> to vector<1x256xf32>
    %303 = vector.broadcast %302 : vector<1x256xf32> to vector<16x256xf32>
    %304 = arith.mulf %300, %303 : vector<16x256xf32>
    %305 = vector.broadcast %301 : vector<16x1xf32> to vector<16x256xf32>
    %306 = arith.mulf %305, %304 : vector<16x256xf32>
    %307 = arith.addf %299, %306 : vector<16x256xf32>
    %c239_i32_86 = arith.constant 239 : i32
    %308 = tpu.dynamic_rotate %248 by %c239_i32_86 dim 1 : vector<16x256xf32>, i32 -> vector<16x256xf32>
    %309 = vector.extract_strided_slice %4 {offsets = [0, 8], sizes = [16, 1], strides = [1, 1]} : vector<16x9xf32> to vector<16x1xf32>
    %310 = vector.extract_strided_slice %6 {offsets = [7, 0], sizes = [1, 256], strides = [1, 1]} : vector<8x256xf32> to vector<1x256xf32>
    %311 = vector.broadcast %310 : vector<1x256xf32> to vector<16x256xf32>
    %312 = arith.mulf %308, %311 : vector<16x256xf32>
    %313 = vector.broadcast %309 : vector<16x1xf32> to vector<16x256xf32>
    %314 = arith.mulf %313, %312 : vector<16x256xf32>
    %315 = arith.addf %307, %314 : vector<16x256xf32>
    %316 = vector.broadcast %5 : vector<16x1xf32> to vector<16x256xf32>
    %317 = arith.addf %315, %316 : vector<16x256xf32>
    %318 = vector.extract_strided_slice %317 {offsets = [0, 0], sizes = [8, 256], strides = [1, 1]} : vector<16x256xf32> to vector<8x256xf32>
    %319 = vector.extract_strided_slice %317 {offsets = [8, 0], sizes = [8, 256], strides = [1, 1]} : vector<16x256xf32> to vector<8x256xf32>
    %c1_87 = arith.constant 1 : index
    %c0_88 = arith.constant 0 : index
    %c0_89 = arith.constant 0 : index
    %320 = vector.load %arg2[%c1_87, %c0_88, %c0_89] : memref<2x8x256xf32, #tpu.memory_space<vmem>>, vector<1x8x256xf32>
    %321 = vector.shape_cast %320 : vector<1x8x256xf32> to vector<8x256xf32>
    %322 = arith.mulf %321, %321 : vector<8x256xf32>
    %cst_90 = arith.constant dense<0.000000e+00> : vector<8xf32>
    %323 = vector.multi_reduction <add>, %322, %cst_90 [1] : vector<8x256xf32> to vector<8xf32>
    %324 = vector.shape_cast %323 : vector<8xf32> to vector<8x1xf32>
    %cst_91 = arith.constant 1.000000e-24 : f32
    %325 = vector.broadcast %cst_91 : f32 to vector<8x1xf32>
    %326 = arith.maximumf %324, %325 : vector<8x1xf32>
    %327 = math.rsqrt %326 : vector<8x1xf32>
    %328 = vector.broadcast %327 : vector<8x1xf32> to vector<8x256xf32>
    %329 = arith.mulf %321, %328 : vector<8x256xf32>
    %330 = arith.mulf %318, %318 : vector<8x256xf32>
    %cst_92 = arith.constant dense<0.000000e+00> : vector<8xf32>
    %331 = vector.multi_reduction <add>, %330, %cst_92 [1] : vector<8x256xf32> to vector<8xf32>
    %332 = vector.shape_cast %331 : vector<8xf32> to vector<8x1xf32>
    %cst_93 = arith.constant 1.000000e-24 : f32
    %333 = vector.broadcast %cst_93 : f32 to vector<8x1xf32>
    %334 = arith.maximumf %332, %333 : vector<8x1xf32>
    %335 = math.rsqrt %334 : vector<8x1xf32>
    %336 = vector.broadcast %335 : vector<8x1xf32> to vector<8x256xf32>
    %337 = arith.mulf %318, %336 : vector<8x256xf32>
    %cst_94 = arith.constant dense<0.000000e+00> : vector<8x8xf32>
    %338 = tpu.matmul %329, %337, %cst_94 {dimension_numbers = #tpu.dot_dimension_numbers<[1], [1], [0], [0], [0, 0, 1, 0], [], []>} : vector<8x256xf32>, vector<8x256xf32>, vector<8x8xf32> -> vector<8x8xf32>
    %339 = arith.mulf %338, %7 : vector<8x8xf32>
    %cst_95 = arith.constant 0.000000e+00 : f32
    %340 = vector.broadcast %cst_95 : f32 to vector<8x8xf32>
    %341 = arith.maximumf %339, %340 : vector<8x8xf32>
    %cst_96 = arith.constant dense<0.000000e+00> : vector<8x256xf32>
    %342 = tpu.matmul %341, %319, %cst_96 {dimension_numbers = #tpu.dot_dimension_numbers<[1], [0], [0], [1], [0, 0, 1, 1], [], []>} : vector<8x8xf32>, vector<8x256xf32>, vector<8x256xf32> -> vector<8x256xf32>
    %343 = arith.mulf %342, %247 : vector<8x256xf32>
    %cst_97 = arith.constant dense<0.000000e+00> : vector<8x256xf32>
    %344 = tpu.matmul %8, %343, %cst_97 {dimension_numbers = #tpu.dot_dimension_numbers<[1], [0], [0], [1], [0, 0, 1, 1], [], []>} : vector<8x8xf32>, vector<8x256xf32>, vector<8x256xf32> -> vector<8x256xf32>
    %345 = vector.broadcast %9 : vector<8x1xf32> to vector<8x256xf32>
    %346 = arith.addf %344, %345 : vector<8x256xf32>
    %c1_98 = arith.constant 1 : index
    %c0_99 = arith.constant 0 : index
    %c0_100 = arith.constant 0 : index
    %347 = vector.load %arg13[%c1_98, %c0_99, %c0_100] : memref<2x8x256xf32, #tpu.memory_space<vmem>>, vector<1x8x256xf32>
    %348 = vector.shape_cast %347 : vector<1x8x256xf32> to vector<8x256xf32>
    %349 = vector.shape_cast %346 : vector<8x256xf32> to vector<1x8x256xf32>
    tpu.vector_store %arg13[%c1_98, %c0_99, %c0_100], %349 {strides = array<i32>} : memref<2x8x256xf32, #tpu.memory_space<vmem>>, vector<1x8x256xf32>,
    return
  }
  func.func @transform_0(%arg0: i32) -> (i32, i32, i32) {
    %c0_i32 = arith.constant 0 : i32
    %c0_i32_0 = arith.constant 0 : i32
    %c0_i32_1 = arith.constant 0 : i32
    return %arg0, %c0_i32, %c0_i32_0 : i32, i32, i32
  }
  func.func @transform_1(%arg0: i32) -> (i32, i32, i32) {
    %c0_i32 = arith.constant 0 : i32
    %c0_i32_0 = arith.constant 0 : i32
    %c0_i32_1 = arith.constant 0 : i32
    return %arg0, %c0_i32, %c0_i32_0 : i32, i32, i32
  }
  func.func @transform_2(%arg0: i32) -> (i32, i32) {
    %c0_i32 = arith.constant 0 : i32
    %c0_i32_0 = arith.constant 0 : i32
    %c0_i32_1 = arith.constant 0 : i32
    return %c0_i32, %c0_i32_0 : i32, i32
  }
  func.func @transform_3(%arg0: i32) -> (i32, i32) {
    %c0_i32 = arith.constant 0 : i32
    %c0_i32_0 = arith.constant 0 : i32
    %c0_i32_1 = arith.constant 0 : i32
    return %c0_i32, %c0_i32_0 : i32, i32
  }
  func.func @transform_4(%arg0: i32) -> (i32, i32) {
    %c0_i32 = arith.constant 0 : i32
    %c0_i32_0 = arith.constant 0 : i32
    %c0_i32_1 = arith.constant 0 : i32
    return %c0_i32, %c0_i32_0 : i32, i32
  }
  func.func @transform_5(%arg0: i32) -> (i32, i32) {
    %c0_i32 = arith.constant 0 : i32
    %c0_i32_0 = arith.constant 0 : i32
    %c0_i32_1 = arith.constant 0 : i32
    return %c0_i32, %c0_i32_0 : i32, i32
  }
  func.func @transform_6(%arg0: i32) -> (i32, i32) {
    %c0_i32 = arith.constant 0 : i32
    %c0_i32_0 = arith.constant 0 : i32
    %c0_i32_1 = arith.constant 0 : i32
    return %c0_i32, %c0_i32_0 : i32, i32
  }
  func.func @transform_7(%arg0: i32) -> (i32, i32) {
    %c0_i32 = arith.constant 0 : i32
    %c0_i32_0 = arith.constant 0 : i32
    %c0_i32_1 = arith.constant 0 : i32
    return %c0_i32, %c0_i32_0 : i32, i32
  }
  func.func @transform_8(%arg0: i32) -> (i32, i32) {
    %c0_i32 = arith.constant 0 : i32
    %c0_i32_0 = arith.constant 0 : i32
    %c0_i32_1 = arith.constant 0 : i32
    return %c0_i32, %c0_i32_0 : i32, i32
  }
  func.func @transform_9(%arg0: i32) -> (i32, i32) {
    %c0_i32 = arith.constant 0 : i32
    %c0_i32_0 = arith.constant 0 : i32
    %c0_i32_1 = arith.constant 0 : i32
    return %c0_i32, %c0_i32_0 : i32, i32
  }
  func.func @transform_10(%arg0: i32) -> (i32, i32) {
    %c0_i32 = arith.constant 0 : i32
    %c0_i32_0 = arith.constant 0 : i32
    %c0_i32_1 = arith.constant 0 : i32
    return %c0_i32, %c0_i32_0 : i32, i32
  }
  func.func @transform_11(%arg0: i32) -> (i32, i32) {
    %c0_i32 = arith.constant 0 : i32
    %c0_i32_0 = arith.constant 0 : i32
    %c0_i32_1 = arith.constant 0 : i32
    return %c0_i32, %c0_i32_0 : i32, i32
  }
  func.func @transform_12(%arg0: i32) -> (i32, i32, i32) {
    %c0_i32 = arith.constant 0 : i32
    %c0_i32_0 = arith.constant 0 : i32
    %c0_i32_1 = arith.constant 0 : i32
    return %arg0, %c0_i32, %c0_i32_0 : i32, i32, i32
  }
}

</mosaic_0001>

<llo_original>
// kernel: wsa_forward.1
$region0: #{wsa_forward.1}
  #allocation0 [shape = 'u32[]', space=smem, size = 0x4, offset = 0x4, fixed_abs, tag = 'smem constant byte address 0x4 - core index']
  #allocation1 [shape = 'u32[144,128]{1,0:T(1,128)}', space=vmem, size = 0x12000, scoped, tag = 'internal scratch']
  %s0 = inlined_call_operand.vmem [shape: f32[4,8,256], index: 0, kind: input, shape index: {}]
  %s1 = inlined_call_operand.vmem [shape: f32[4,8,256], index: 1, kind: input, shape index: {}]
  %s2 = inlined_call_operand.vmem [shape: f32[8,1], index: 2, kind: input, shape index: {}]
  %s3 = inlined_call_operand.vmem [shape: f32[8,1], index: 3, kind: input, shape index: {}]
  %s4 = inlined_call_operand.vmem [shape: f32[24,8], index: 4, kind: input, shape index: {}]
  %s5 = inlined_call_operand.vmem [shape: f32[24,1], index: 5, kind: input, shape index: {}]
  %s6 = inlined_call_operand.vmem [shape: f32[16,9], index: 6, kind: input, shape index: {}]
  %s7 = inlined_call_operand.vmem [shape: f32[16,1], index: 7, kind: input, shape index: {}]
  %s8 = inlined_call_operand.vmem [shape: f32[8,256], index: 8, kind: input, shape index: {}]
  %s9 = inlined_call_operand.vmem [shape: f32[8,8], index: 9, kind: input, shape index: {}]
  %s10 = inlined_call_operand.vmem [shape: f32[8,8], index: 10, kind: input, shape index: {}]
  %s11 = inlined_call_operand.vmem [shape: f32[8,1], index: 11, kind: input, shape index: {}]
  %s12 = inlined_call_operand.vmem [shape: f32[4,8,256], index: 12, kind: output, shape index: {}]
  %s13 = sld [smem:[#allocation0]]
  $region81: #{wsa_forward.1} parent=0
    _
  %s15 = ssub.s32 1, %s13
  %s16 = scalar_select 0, %s15, %s13
  loop: start=0, step=1, limit=4
  $region2: #{wsa_forward.1} parent=0 // loop_pre_header
    _
  $region3: #{wsa_forward.1} parent=0 // loop_header
    %s18 = sphi 0, %s22
    %p19 = scmp.ge.s32.totalorder %s18, 4
    %s28 = sphi 0, %s30
    %s31 = sphi 0, %s28
    %s32 = sphi 0, %s31
    %s48 = sphi 0, %s32
    %s54 = sphi 0, %s56
    %s57 = sphi 0, %s54
    %s58 = sphi 0, %s57
    %s74 = sphi 0, %s58
    %s78 = sphi 0, %s78
    %s80 = sphi 0, %s78
    %s81 = sphi 0, %s80
    %s95 = sphi 0, %s81
    %s99 = sphi 0, %s99
    %s101 = sphi 0, %s99
    %s102 = sphi 0, %s101
    %s116 = sphi 0, %s102
    %s120 = sphi 0, %s120
    %s122 = sphi 0, %s120
    %s123 = sphi 0, %s122
    %s137 = sphi 0, %s123
    %s141 = sphi 0, %s141
    %s143 = sphi 0, %s141
    %s144 = sphi 0, %s143
    %s158 = sphi 0, %s144
    %s162 = sphi 0, %s162
    %s164 = sphi 0, %s162
    %s165 = sphi 0, %s164
    %s179 = sphi 0, %s165
    %s183 = sphi 0, %s183
    %s185 = sphi 0, %s183
    %s186 = sphi 0, %s185
    %s200 = sphi 0, %s186
    %s204 = sphi 0, %s204
    %s206 = sphi 0, %s204
    %s207 = sphi 0, %s206
    %s221 = sphi 0, %s207
    %s225 = sphi 0, %s225
    %s227 = sphi 0, %s225
    %s228 = sphi 0, %s227
    %s242 = sphi 0, %s228
    %s246 = sphi 0, %s246
    %s248 = sphi 0, %s246
    %s249 = sphi 0, %s248
    %s263 = sphi 0, %s249
    %s267 = sphi 0, %s267
    %s269 = sphi 0, %s267
    %s270 = sphi 0, %s269
    %s284 = sphi 0, %s270
    %s290 = sphi 0, %s292
    %s293 = sphi 0, %s290
    %s294 = sphi 0, %s293
    %s310 = sphi 0, %s294
  $region4: #{wsa_forward.1} parent=0 // loop_header_branch
    %21 = sbr.rel (%p19) target = $region8
  $region5: #{wsa_forward.1} parent=0 // loop_body
    %s23 = ssub.s32 %s18, 1
    %s24 = ssub.s32 %s18, 2
    %s25 = sadd.s32 %s18, 1
    %s26 = ssub.s32 %s18, %s25
    %p27 = scmp.eq.s32.totalorder %s26, 0
    %s29 = sadd.s32 %s28, 1
    %s30 = scalar_select %p27, %s28, %s29
    %p33 = pneg %p27
    %p34 = scmp.eq.s32.totalorder %s18, 1
    %p35 = por %p33, %p34
    %p36 = scmp.ne.s32.totalorder %s28, %s31
    %p37 = scmp.eq.s32.totalorder %s18, 0
    %p38 = por %p36, %p37
    %p39 = scmp.ne.s32.totalorder %s28, %s31
    %p40 = scmp.eq.s32.totalorder %s23, 1
    %p41 = por %p39, %p40
    %p42 = scmp.ne.s32.totalorder %s31, %s32
    %p43 = scmp.eq.s32.totalorder %s23, 0
    %p44 = por %p42, %p43
    %p45 = scmp.ne.s32.totalorder %s31, %s32
    %p46 = scmp.eq.s32.totalorder %s24, 1
    %p47 = por %p45, %p46
    %p49 = scmp.ne.s32.totalorder %s32, %s48
    %p50 = scmp.eq.s32.totalorder %s24, 0
    %p51 = por %p49, %p50
    %s52 = ssub.s32 %s18, %s25
    %p53 = scmp.eq.s32.totalorder %s52, 0
    %s55 = sadd.s32 %s54, 1
    %s56 = scalar_select %p53, %s54, %s55
    %p59 = pneg %p53
    %p60 = scmp.eq.s32.totalorder %s18, 1
    %p61 = por %p59, %p60
    %p62 = scmp.ne.s32.totalorder %s54, %s57
    %p63 = scmp.eq.s32.totalorder %s18, 0
    %p64 = por %p62, %p63
    %p65 = scmp.ne.s32.totalorder %s54, %s57
    %p66 = scmp.eq.s32.totalorder %s23, 1
    %p67 = por %p65, %p66
    %p68 = scmp.ne.s32.totalorder %s57, %s58
    %p69 = scmp.eq.s32.totalorder %s23, 0
    %p70 = por %p68, %p69
    %p71 = scmp.ne.s32.totalorder %s57, %s58
    %p72 = scmp.eq.s32.totalorder %s24, 1
    %p73 = por %p71, %p72
    %p75 = scmp.ne.s32.totalorder %s58, %s74
    %p76 = scmp.eq.s32.totalorder %s24, 0
    %p77 = por %p75, %p76
    %s79 = sadd.s32 %s78, 1
    %p82 = scmp.eq.s32.totalorder %s18, 1
    %p83 = scmp.ne.s32.totalorder %s78, %s80
    %p84 = scmp.eq.s32.totalorder %s18, 0
    %p85 = por %p83, %p84
    %p86 = scmp.ne.s32.totalorder %s78, %s80
    %p87 = scmp.eq.s32.totalorder %s23, 1
    %p88 = por %p86, %p87
    %p89 = scmp.ne.s32.totalorder %s80, %s81
    %p90 = scmp.eq.s32.totalorder %s23, 0
    %p91 = por %p89, %p90
    %p92 = scmp.ne.s32.totalorder %s80, %s81
    %p93 = scmp.eq.s32.totalorder %s24, 1
    %p94 = por %p92, %p93
    %p96 = scmp.ne.s32.totalorder %s81, %s95
    %p97 = scmp.eq.s32.totalorder %s24, 0
    %p98 = por %p96, %p97
    %s100 = sadd.s32 %s99, 1
    %p103 = scmp.eq.s32.totalorder %s18, 1
    %p104 = scmp.ne.s32.totalorder %s99, %s101
    %p105 = scmp.eq.s32.totalorder %s18, 0
    %p106 = por %p104, %p105
    %p107 = scmp.ne.s32.totalorder %s99, %s101
    %p108 = scmp.eq.s32.totalorder %s23, 1
    %p109 = por %p107, %p108
    %p110 = scmp.ne.s32.totalorder %s101, %s102
    %p111 = scmp.eq.s32.totalorder %s23, 0
    %p112 = por %p110, %p111
    %p113 = scmp.ne.s32.totalorder %s101, %s102
    %p114 = scmp.eq.s32.totalorder %s24, 1
    %p115 = por %p113, %p114
    %p117 = scmp.ne.s32.totalorder %s102, %s116
    %p118 = scmp.eq.s32.totalorder %s24, 0
    %p119 = por %p117, %p118
    %s121 = sadd.s32 %s120, 1
    %p124 = scmp.eq.s32.totalorder %s18, 1
    %p125 = scmp.ne.s32.totalorder %s120, %s122
    %p126 = scmp.eq.s32.totalorder %s18, 0
    %p127 = por %p125, %p126
    %p128 = scmp.ne.s32.totalorder %s120, %s122
    %p129 = scmp.eq.s32.totalorder %s23, 1
    %p130 = por %p128, %p129
    %p131 = scmp.ne.s32.totalorder %s122, %s123
    %p132 = scmp.eq.s32.totalorder %s23, 0
    %p133 = por %p131, %p132
    %p134 = scmp.ne.s32.totalorder %s122, %s123
    %p135 = scmp.eq.s32.totalorder %s24, 1
    %p136 = por %p134, %p135
    %p138 = scmp.ne.s32.totalorder %s123, %s137
    %p139 = scmp.eq.s32.totalorder %s24, 0
    %p140 = por %p138, %p139
    %s142 = sadd.s32 %s141, 1
    %p145 = scmp.eq.s32.totalorder %s18, 1
    %p146 = scmp.ne.s32.totalorder %s141, %s143
    %p147 = scmp.eq.s32.totalorder %s18, 0
    %p148 = por %p146, %p147
    %p149 = scmp.ne.s32.totalorder %s141, %s143
    %p150 = scmp.eq.s32.totalorder %s23, 1
    %p151 = por %p149, %p150
    %p152 = scmp.ne.s32.totalorder %s143, %s144
    %p153 = scmp.eq.s32.totalorder %s23, 0
    %p154 = por %p152, %p153
    %p155 = scmp.ne.s32.totalorder %s143, %s144
    %p156 = scmp.eq.s32.totalorder %s24, 1
    %p157 = por %p155, %p156
    %p159 = scmp.ne.s32.totalorder %s144, %s158
    %p160 = scmp.eq.s32.totalorder %s24, 0
    %p161 = por %p159, %p160
    %s163 = sadd.s32 %s162, 1
    %p166 = scmp.eq.s32.totalorder %s18, 1
    %p167 = scmp.ne.s32.totalorder %s162, %s164
    %p168 = scmp.eq.s32.totalorder %s18, 0
    %p169 = por %p167, %p168
    %p170 = scmp.ne.s32.totalorder %s162, %s164
    %p171 = scmp.eq.s32.totalorder %s23, 1
    %p172 = por %p170, %p171
    %p173 = scmp.ne.s32.totalorder %s164, %s165
    %p174 = scmp.eq.s32.totalorder %s23, 0
    %p175 = por %p173, %p174
    %p176 = scmp.ne.s32.totalorder %s164, %s165
    %p177 = scmp.eq.s32.totalorder %s24, 1
    %p178 = por %p176, %p177
    %p180 = scmp.ne.s32.totalorder %s165, %s179
    %p181 = scmp.eq.s32.totalorder %s24, 0
    %p182 = por %p180, %p181
    %s184 = sadd.s32 %s183, 1
    %p187 = scmp.eq.s32.totalorder %s18, 1
    %p188 = scmp.ne.s32.totalorder %s183, %s185
    %p189 = scmp.eq.s32.totalorder %s18, 0
    %p190 = por %p188, %p189
    %p191 = scmp.ne.s32.totalorder %s183, %s185
    %p192 = scmp.eq.s32.totalorder %s23, 1
    %p193 = por %p191, %p192
    %p194 = scmp.ne.s32.totalorder %s185, %s186
    %p195 = scmp.eq.s32.totalorder %s23, 0
    %p196 = por %p194, %p195
    %p197 = scmp.ne.s32.totalorder %s185, %s186
    %p198 = scmp.eq.s32.totalorder %s24, 1
    %p199 = por %p197, %p198
    %p201 = scmp.ne.s32.totalorder %s186, %s200
    %p202 = scmp.eq.s32.totalorder %s24, 0
    %p203 = por %p201, %p202
    %s205 = sadd.s32 %s204, 1
    %p208 = scmp.eq.s32.totalorder %s18, 1
    %p209 = scmp.ne.s32.totalorder %s204, %s206
    %p210 = scmp.eq.s32.totalorder %s18, 0
    %p211 = por %p209, %p210
    %p212 = scmp.ne.s32.totalorder %s204, %s206
    %p213 = scmp.eq.s32.totalorder %s23, 1
    %p214 = por %p212, %p213
    %p215 = scmp.ne.s32.totalorder %s206, %s207
    %p216 = scmp.eq.s32.totalorder %s23, 0
    %p217 = por %p215, %p216
    %p218 = scmp.ne.s32.totalorder %s206, %s207
    %p219 = scmp.eq.s32.totalorder %s24, 1
    %p220 = por %p218, %p219
    %p222 = scmp.ne.s32.totalorder %s207, %s221
    %p223 = scmp.eq.s32.totalorder %s24, 0
    %p224 = por %p222, %p223
    %s226 = sadd.s32 %s225, 1
    %p229 = scmp.eq.s32.totalorder %s18, 1
    %p230 = scmp.ne.s32.totalorder %s225, %s227
    %p231 = scmp.eq.s32.totalorder %s18, 0
    %p232 = por %p230, %p231
    %p233 = scmp.ne.s32.totalorder %s225, %s227
    %p234 = scmp.eq.s32.totalorder %s23, 1
    %p235 = por %p233, %p234
    %p236 = scmp.ne.s32.totalorder %s227, %s228
    %p237 = scmp.eq.s32.totalorder %s23, 0
    %p238 = por %p236, %p237
    %p239 = scmp.ne.s32.totalorder %s227, %s228
    %p240 = scmp.eq.s32.totalorder %s24, 1
    %p241 = por %p239, %p240
    %p243 = scmp.ne.s32.totalorder %s228, %s242
    %p244 = scmp.eq.s32.totalorder %s24, 0
    %p245 = por %p243, %p244
    %s247 = sadd.s32 %s246, 1
    %p250 = scmp.eq.s32.totalorder %s18, 1
    %p251 = scmp.ne.s32.totalorder %s246, %s248
    %p252 = scmp.eq.s32.totalorder %s18, 0
    %p253 = por %p251, %p252
    %p254 = scmp.ne.s32.totalorder %s246, %s248
    %p255 = scmp.eq.s32.totalorder %s23, 1
    %p256 = por %p254, %p255
    %p257 = scmp.ne.s32.totalorder %s248, %s249
    %p258 = scmp.eq.s32.totalorder %s23, 0
    %p259 = por %p257, %p258
    %p260 = scmp.ne.s32.totalorder %s248, %s249
    %p261 = scmp.eq.s32.totalorder %s24, 1
    %p262 = por %p260, %p261
    %p264 = scmp.ne.s32.totalorder %s249, %s263
    %p265 = scmp.eq.s32.totalorder %s24, 0
    %p266 = por %p264, %p265
    %s268 = sadd.s32 %s267, 1
    %p271 = scmp.eq.s32.totalorder %s18, 1
    %p272 = scmp.ne.s32.totalorder %s267, %s269
    %p273 = scmp.eq.s32.totalorder %s18, 0
    %p274 = por %p272, %p273
    %p275 = scmp.ne.s32.totalorder %s267, %s269
    %p276 = scmp.eq.s32.totalorder %s23, 1
    %p277 = por %p275, %p276
    %p278 = scmp.ne.s32.totalorder %s269, %s270
    %p279 = scmp.eq.s32.totalorder %s23, 0
    %p280 = por %p278, %p279
    %p281 = scmp.ne.s32.totalorder %s269, %s270
    %p282 = scmp.eq.s32.totalorder %s24, 1
    %p283 = por %p281, %p282
    %p285 = scmp.ne.s32.totalorder %s270, %s284
    %p286 = scmp.eq.s32.totalorder %s24, 0
    %p287 = por %p285, %p286
    %s288 = ssub.s32 %s18, %s25
    %p289 = scmp.eq.s32.totalorder %s288, 0
    %s291 = sadd.s32 %s290, 1
    %s292 = scalar_select %p289, %s290, %s291
    %p295 = pneg %p289
    %p296 = scmp.eq.s32.totalorder %s18, 1
    %p297 = por %p295, %p296
    %p298 = scmp.ne.s32.totalorder %s290, %s293
    %p299 = scmp.eq.s32.totalorder %s18, 0
    %p300 = por %p298, %p299
    %p301 = scmp.ne.s32.totalorder %s290, %s293
    %p302 = scmp.eq.s32.totalorder %s23, 1
    %p303 = por %p301, %p302
    %p304 = scmp.ne.s32.totalorder %s293, %s294
    %p305 = scmp.eq.s32.totalorder %s23, 0
    %p306 = por %p304, %p305
    %p307 = scmp.ne.s32.totalorder %s293, %s294
    %p308 = scmp.eq.s32.totalorder %s24, 1
    %p309 = por %p307, %p308
    %p311 = scmp.ne.s32.totalorder %s294, %s310
    %p312 = scmp.eq.s32.totalorder %s24, 0
    %p313 = por %p311, %p312
    %p314 = scmp.le.s32.totalorder 1, %s18
    %p315 = scmp.lt.s32.totalorder %s18, 3
    %p316 = pnand %p314, %p315
    %p317 = pneg %p316
    // Predicated region
    $region9: #{wsa_forward.1} parent=5 // pred_check
      _
    $region10: #{wsa_forward.1} parent=5 // pred_check_branch
      %319 = sbr.rel (%p316) target = $region12
    $region11: #{wsa_forward.1} parent=5 // pred_region
      %s320 = ssub.s32 %s18, 1
      // Predicated region
      $region13: #{wsa_forward.1} parent=11 // pred_check
        %p321 = pneg %p91
      $region14: #{wsa_forward.1} parent=11 // pred_check_branch
        %323 = sbr.rel (%p321) target = $region16
      $region15: #{wsa_forward.1} parent=11 // pred_region
        _
      $region16: #{wsa_forward.1} parent=11 // pred_fallthru
        _
      // Predicated region
      $region17: #{wsa_forward.1} parent=11 // pred_check
        %p324 = pneg %p112
      $region18: #{wsa_forward.1} parent=11 // pred_check_branch
        %326 = sbr.rel (%p324) target = $region20
      $region19: #{wsa_forward.1} parent=11 // pred_region
        _
      $region20: #{wsa_forward.1} parent=11 // pred_fallthru
        _
      // Predicated region
      $region21: #{wsa_forward.1} parent=11 // pred_check
        %p327 = pneg %p133
      $region22: #{wsa_forward.1} parent=11 // pred_check_branch
        %329 = sbr.rel (%p327) target = $region24
      $region23: #{wsa_forward.1} parent=11 // pred_region
        _
      $region24: #{wsa_forward.1} parent=11 // pred_fallthru
        _
      // Predicated region
      $region25: #{wsa_forward.1} parent=11 // pred_check
        %p330 = pneg %p154
      $region26: #{wsa_forward.1} parent=11 // pred_check_branch
        %332 = sbr.rel (%p330) target = $region28
      $region27: #{wsa_forward.1} parent=11 // pred_region
        _
      $region28: #{wsa_forward.1} parent=11 // pred_fallthru
        _
      // Predicated region
      $region29: #{wsa_forward.1} parent=11 // pred_check
        %p333 = pneg %p175
      $region30: #{wsa_forward.1} parent=11 // pred_check_branch
        %335 = sbr.rel (%p333) target = $region32
      $region31: #{wsa_forward.1} parent=11 // pred_region
        _
      $region32: #{wsa_forward.1} parent=11 // pred_fallthru
        _
      // Predicated region
      $region33: #{wsa_forward.1} parent=11 // pred_check
        %p336 = pneg %p196
      $region34: #{wsa_forward.1} parent=11 // pred_check_branch
        %338 = sbr.rel (%p336) target = $region36
      $region35: #{wsa_forward.1} parent=11 // pred_region
        _
      $region36: #{wsa_forward.1} parent=11 // pred_fallthru
        _
      // Predicated region
      $region37: #{wsa_forward.1} parent=11 // pred_check
        %p339 = pneg %p217
      $region38: #{wsa_forward.1} parent=11 // pred_check_branch
        %341 = sbr.rel (%p339) target = $region40
      $region39: #{wsa_forward.1} parent=11 // pred_region
        _
      $region40: #{wsa_forward.1} parent=11 // pred_fallthru
        _
      // Predicated region
      $region41: #{wsa_forward.1} parent=11 // pred_check
        %p342 = pneg %p238
      $region42: #{wsa_forward.1} parent=11 // pred_check_branch
        %344 = sbr.rel (%p342) target = $region44
      $region43: #{wsa_forward.1} parent=11 // pred_region
        _
      $region44: #{wsa_forward.1} parent=11 // pred_fallthru
        _
      // Predicated region
      $region45: #{wsa_forward.1} parent=11 // pred_check
        %p345 = pneg %p259
      $region46: #{wsa_forward.1} parent=11 // pred_check_branch
        %347 = sbr.rel (%p345) target = $region48
      $region47: #{wsa_forward.1} parent=11 // pred_region
        _
      $region48: #{wsa_forward.1} parent=11 // pred_fallthru
        _
      // Predicated region
      $region49: #{wsa_forward.1} parent=11 // pred_check
        %p348 = pneg %p280
      $region50: #{wsa_forward.1} parent=11 // pred_check_branch
        %350 = sbr.rel (%p348) target = $region52
      $region51: #{wsa_forward.1} parent=11 // pred_region
        _
      $region52: #{wsa_forward.1} parent=11 // pred_fallthru
        _
    $region12: #{wsa_forward.1} parent=5 // pred_fallthru
      _
    %p351 = scmp.lt.s32.totalorder %s18, 2
    // Predicated region
    $region53: #{wsa_forward.1} parent=5 // pred_check
      %p352 = pneg %p351
    $region54: #{wsa_forward.1} parent=5 // pred_check_branch
      %354 = sbr.rel (%p352) target = $region56
    $region55: #{wsa_forward.1} parent=5 // pred_region
      // Predicated region
      $region57: #{wsa_forward.1} parent=55 // pred_check
        %p355 = pneg %p38
      $region58: #{wsa_forward.1} parent=55 // pred_check_branch
        %357 = sbr.rel (%p355) target = $region60
      $region59: #{wsa_forward.1} parent=55 // pred_region
        %s358 = smul.u32 2, %s18
        %p359 = scmp.lt.s32.totalorder %s358, 3
        %s360 = scalar_select %p359, %s358, 3
        %s361 = smul.addr %s360, 2
        %s362 = smul.addr %s361, 8
        %s363 = scalar_lea.vmem %s0, %s362
        %s364 = smul.u32 2, %s18
      $region60: #{wsa_forward.1} parent=55 // pred_fallthru
        _
      // Predicated region
      $region61: #{wsa_forward.1} parent=55 // pred_check
        %p365 = pneg %p64
      $region62: #{wsa_forward.1} parent=55 // pred_check_branch
        %367 = sbr.rel (%p365) target = $region64
      $region63: #{wsa_forward.1} parent=55 // pred_region
        %s368 = smul.u32 2, %s18
        %p369 = scmp.lt.s32.totalorder %s368, 3
        %s370 = scalar_select %p369, %s368, 3
        %s371 = smul.addr %s370, 2
        %s372 = smul.addr %s371, 8
        %s373 = scalar_lea.vmem %s1, %s372
        %s374 = smul.u32 2, %s18
      $region64: #{wsa_forward.1} parent=55 // pred_fallthru
        _
    $region56: #{wsa_forward.1} parent=5 // pred_fallthru
      _
    %p375 = scmp.le.s32.totalorder 1, %s18
    %p376 = scmp.lt.s32.totalorder %s18, 3
    %p377 = pnand %p375, %p376
    %p378 = pneg %p377
    // Predicated region
    $region65: #{wsa_forward.1} parent=5 // pred_check
      _
    $region66: #{wsa_forward.1} parent=5 // pred_check_branch
      %380 = sbr.rel (%p377) target = $region68
    $region67: #{wsa_forward.1} parent=5 // pred_region
      %s381 = ssub.s32 %s18, 1
      %s382 = smul.u32 2, %s23
      %p383 = scmp.lt.s32.totalorder %s382, 3
      %s384 = scalar_select %p383, %s382, 3
      %s385 = smul.addr %s384, 2
      %s386 = smul.addr %s385, 8
      %s387 = scalar_lea.vmem %s0, %s386
      %p388 = pneg %p44
      %p389 = pneg %p41
      %s390 = smul.u32 2, %s23
      %p391 = scmp.lt.s32.totalorder %s390, 3
      %s392 = scalar_select %p391, %s390, 3
      %s393 = smul.addr %s392, 2
      %s394 = smul.addr %s393, 8
      %s395 = scalar_lea.vmem %s1, %s394
      %p396 = pneg %p70
      %p397 = pneg %p67
      %p398 = pneg %p91
      %p399 = pneg %p88
      %p400 = pneg %p112
      %p401 = pneg %p109
      %p402 = pneg %p133
      %p403 = pneg %p130
      %p404 = pneg %p154
      %p405 = pneg %p151
      %p406 = pneg %p175
      %p407 = pneg %p172
      %p408 = pneg %p196
      %p409 = pneg %p193
      %p410 = pneg %p217
      %p411 = pneg %p214
      %p412 = pneg %p238
      %p413 = pneg %p235
      %p414 = pneg %p259
      %p415 = pneg %p256
      %p416 = pneg %p280
      %p417 = pneg %p277
      %p418 = pneg %p306
      %p419 = pneg %p303
      %s420 = smul.u32 2, %s23
      %p421 = scmp.lt.s32.totalorder %s420, 3
      %s422 = scalar_select %p421, %s420, 3
      %s423 = smul.addr %s422, 2
      %s424 = smul.addr %s423, 8
      %s425 = scalar_lea.vmem %s12, %s424
      %s426 = smul.u32 2, %s23
      %p427 = scmp.lt.s32.totalorder %s426, 3
      %s428 = scalar_select %p427, %s426, 3
      %s429 = smul.addr %s428, 2
      %s430 = smul.addr %s429, 8
      %s431 = scalar_lea.vmem %s0, %s430
      %s432 = smul.u32 2, %s23
      %s433 = smul.u32 2, %s23
      %p434 = scmp.lt.s32.totalorder %s433, 3
      %s435 = scalar_select %p434, %s433, 3
      %s436 = smul.addr %s435, 2
      %s437 = smul.addr %s436, 8
      %s438 = scalar_lea.vmem %s1, %s437
      %s439 = smul.u32 2, %s23
      %s440 = smul.u32 2, %s23
      %p441 = scmp.lt.s32.totalorder %s440, 3
      %s442 = scalar_select %p441, %s440, 3
      %s443 = smul.addr %s442, 2
      %s444 = smul.addr %s443, 8
      %s445 = scalar_lea.vmem %s12, %s444
      %s446 = smul.u32 2, %s23
      %v447 = vld [vmem:[%s2] sm:$0xff]
      %v448 = vld [vmem:[%s3] sm:$0xff]
      %v449 = vld [vmem:[%s4] sm:$0xff]
      %v450 = vld [vmem:[%s4 + $0x8] sm:$0xff]
      %v451 = vld [vmem:[%s4 + $0x10] sm:$0xff]
      %v452 = vld [vmem:[%s5] sm:$0xff]
      %v453 = vld [vmem:[%s5 + $0x8] sm:$0xff]
      %v454 = vld [vmem:[%s5 + $0x10] sm:$0xff]
      %v455 = vld [vmem:[%s6] sm:$0xff]
      %v456 = vld [vmem:[%s6 + $0x8] sm:$0xff]
      %v457 = vld [vmem:[%s7] sm:$0xff]
      %v458 = vld [vmem:[%s7 + $0x8] sm:$0xff]
      %v459 = vld [vmem:[%s8] sm:$0xff]
      %v460 = vld [vmem:[%s8 + $0x8] sm:$0xff]
      %v461 = vld [vmem:[%s9] sm:$0xff]
      %v462 = vld [vmem:[%s10] sm:$0xff]
      %v463 = vld [vmem:[%s11] sm:$0xff]
      %v464 = vld [vmem:[%s431] sm:$0xff]
      %v465 = vld [vmem:[%s431 + $0x8] sm:$0xff]
      %v466 = vrot.slane %v464, 4
      %v467 = vadd.f32 %v464, %v466
      %v468 = vrot.slane %v467, 2
      %v469 = vadd.f32 %v467, %v468
      %v470 = vrot.slane %v469, 1
      %v471 = vadd.f32 %v469, %v470
      %v472 = vrot.slane %v465, 4
      %v473 = vadd.f32 %v465, %v472
      %v474 = vrot.slane %v473, 2
      %v475 = vadd.f32 %v473, %v474
      %v476 = vrot.slane %v475, 1
      %v477 = vadd.f32 %v475, %v476
      %v478 = vrcp.pop 8.0
      %v479 = vmul.f32 %v471, %v478
      %v480 = vmul.f32 %v477, %v478
      %v481 = vsub.f32 %v464, %v479
      %v482 = vsub.f32 %v465, %v480
      %v483 = vmul.f32 %v481, %v481
      %v484 = vmul.f32 %v482, %v482
      %v485 = vrot.slane %v483, 4
      %v486 = vadd.f32 %v483, %v485
      %v487 = vrot.slane %v486, 2
      %v488 = vadd.f32 %v486, %v487
      %v489 = vrot.slane %v488, 1
      %v490 = vadd.f32 %v488, %v489
      %v491 = vrot.slane %v484, 4
      %v492 = vadd.f32 %v484, %v491
      %v493 = vrot.slane %v492, 2
      %v494 = vadd.f32 %v492, %v493
      %v495 = vrot.slane %v494, 1
      %v496 = vadd.f32 %v494, %v495
      %v497 = vmul.f32 %v490, %v478
      %v498 = vmul.f32 %v496, %v478
      %v499 = vadd.f32 %v497, 1e-05
      %v500 = vadd.f32 %v498, 1e-05
      %v501 = vrsqrt.pop %v499
      %v502 = vrsqrt.pop %v500
      %v503 = vmul.f32 %v481, %v501
      %v504 = vmul.f32 %v482, %v502
      %506 = vset.pattern.permute.xlu0 0
      %507 = vperm.xlu0 %506, %v447
      %v508 = vpop.permute.xlu0 %507
      %v510 = vmul.f32 %v503, %v508
      %v511 = vmul.f32 %v504, %v508
      %513 = vset.pattern.permute.xlu0 0
      %514 = vperm.xlu0 %513, %v448
      %v515 = vpop.permute.xlu0 %514
      %v517 = vadd.f32 %v510, %v515
      %v518 = vadd.f32 %v511, %v515
      %520 = vset.pattern.permute.xlu0 0
      %521 = vperm.xlu0 %520, %v452
      %v522 = vpop.permute.xlu0 %521
      %525 = vset.pattern.permute.xlu0 0
      %526 = vperm.xlu0 %525, %v453
      %v527 = vpop.permute.xlu0 %526
      %530 = vset.pattern.permute.xlu0 0
      %531 = vperm.xlu0 %530, %v454
      %v532 = vpop.permute.xlu0 %531
      %vm534 = vcmask 64512
      %v536 = vsel %vm534, %v449, 0
      %v539 = vsel %vm534, %v450, 0
      %v542 = vsel %vm534, %v451, 0
      %544 = vmatprep.subr.mxu0 0.0
      %545 = vmatpush1.msra.mxu0 0.0
      %546 = vmatprep.subr.mxu0 0.0
      %547 = vmatpush1.msra.mxu0 0.0
      %548 = vmatprep.subr.mxu0 0.0
      %549 = vmatpush1.msra.mxu0 0.0
      %550 = vmatprep.subr.mxu0 0.0
      %551 = vmatpush1.msra.mxu0 0.0
      %552 = vmatprep.subr.mxu0 0.0
      %553 = vmatpush1.msra.mxu0 0.0
      %554 = vmatprep.subr.mxu0 0.0
      %555 = vmatpush1.msra.mxu0 0.0
      %556 = vmatprep.subr.mxu0 0.0
      %557 = vmatpush1.msra.mxu0 0.0
      %558 = vmatprep.subr.mxu0 0.0
      %559 = vmatpush1.msra.mxu0 0.0
      %560 = vmatprep.subr.mxu0 0.0
      %561 = vmatpush1.msra.mxu0 0.0
      %562 = vmatprep.subr.mxu0 0.0
      %563 = vmatpush1.msra.mxu0 0.0
      %564 = vmatprep.subr.mxu0 0.0
      %565 = vmatpush1.msra.mxu0 0.0
      %566 = vmatprep.subr.mxu0 0.0
      %567 = vmatpush1.msra.mxu0 0.0
      %568 = vmatprep.subr.mxu0 0.0
      %569 = vmatpush1.msra.mxu0 0.0
      %570 = vmatprep.subr.mxu0 0.0
      %571 = vmatpush1.msra.mxu0 0.0
      %572 = vmatprep.subr.mxu0 0.0
      %573 = vmatpush1.msra.mxu0 0.0
      %574 = vmatprep.subr.mxu0 %v518
      %575 = vmatpush1.msra.mxu0 %v517
      %576 = vmatprep.subr.mxu0 0.0
      %577 = vmatpush2.msra.mxu0 0.0
      %578 = vmatprep.subr.mxu0 0.0
      %579 = vmatpush2.msra.mxu0 0.0
      %580 = vmatprep.subr.mxu0 0.0
      %581 = vmatpush2.msra.mxu0 0.0
      %582 = vmatprep.subr.mxu0 0.0
      %583 = vmatpush2.msra.mxu0 0.0
      %584 = vmatprep.subr.mxu0 0.0
      %585 = vmatpush2.msra.mxu0 0.0
      %586 = vmatprep.subr.mxu0 0.0
      %587 = vmatpush2.msra.mxu0 0.0
      %588 = vmatprep.subr.mxu0 0.0
      %589 = vmatpush2.msra.mxu0 0.0
      %590 = vmatprep.subr.mxu0 0.0
      %591 = vmatpush2.msra.mxu0 0.0
      %592 = vmatprep.subr.mxu0 0.0
      %593 = vmatpush2.msra.mxu0 0.0
      %594 = vmatprep.subr.mxu0 0.0
      %595 = vmatpush2.msra.mxu0 0.0
      %596 = vmatprep.subr.mxu0 0.0
      %597 = vmatpush2.msra.mxu0 0.0
      %598 = vmatprep.subr.mxu0 0.0
      %599 = vmatpush2.msra.mxu0 0.0
      %600 = vmatprep.subr.mxu0 0.0
      %601 = vmatpush2.msra.mxu0 0.0
      %602 = vmatprep.subr.mxu0 0.0
      %603 = vmatpush2.msra.mxu0 0.0
      %604 = vmatprep.subr.mxu0 0.0
      %605 = vmatpush2.msra.mxu0 0.0
      %606 = vmatprep.subr.mxu0 0.0
      %607 = vmatpush2.msra.mxu0 0.0
      %608 = vmatprep.mubr.f32.mxu0 0.0
      %609 = vmatmul.mubr.f32.gmra.mxu0 %v536
      %v610 = vpop.f32.mrf.mxu0
      %v611 = vadd.f32 %v522, %v610
      %v612 = vpop.f32.mrf.mxu0
      %v613 = vadd.f32 %v522, %v612
      %614 = vmatprep.mubr.f32.mxu0 0.0
      %615 = vmatmul.mubr.f32.gmra.mxu0 %v539
      %v616 = vpop.f32.mrf.mxu0
      %v617 = vadd.f32 %v527, %v616
      %v618 = vpop.f32.mrf.mxu0
      %v619 = vadd.f32 %v527, %v618
      %620 = vmatprep.mubr.f32.mxu0 0.0
      %621 = vmatmul.mubr.f32.gmra.mxu0 %v542
      %v622 = vpop.f32.mrf.mxu0
      %v623 = vadd.f32 %v532, %v622
      %v624 = vpop.f32.mrf.mxu0
      %v625 = vadd.f32 %v532, %v624
      %626 = vdwg.mxu0
      %v627 = vmul.f32 %v611, 0.5
      %v628 = vmul.f32 %v613, 0.5
      %v629 = vmul.f32 %v611, 0.70710677
      %v630 = vmul.f32 %v613, 0.70710677
      %v631 = vand.u32 2147483647, %v629
      %v632 = vand.u32 2147483647, %v630
      %v633 = vmul.f32 %v631, 0.3275911
      %v634 = vmul.f32 %v632, 0.3275911
      %v635 = vadd.f32 %v633, 1.0
      %v636 = vadd.f32 %v634, 1.0
      %v637 = vrcp.pop %v635
      %v638 = vmul.f32 1.0, %v637
      %v639 = vrcp.pop %v636
      %v640 = vmul.f32 1.0, %v639
      %v641 = vmul.f32 %v638, 1.0614054
      %v642 = vmul.f32 %v640, 1.0614054
      %v643 = vadd.f32 %v641, -1.4531521
      %v644 = vadd.f32 %v642, -1.4531521
      %v645 = vmul.f32 %v643, %v638
      %v646 = vmul.f32 %v644, %v640
      %v647 = vadd.f32 %v645, 1.4214138
      %v648 = vadd.f32 %v646, 1.4214138
      %v649 = vmul.f32 %v647, %v638
      %v650 = vmul.f32 %v648, %v640
      %v651 = vadd.f32 %v649, -0.28449672
      %v652 = vadd.f32 %v650, -0.28449672
      %v653 = vmul.f32 %v651, %v638
      %v654 = vmul.f32 %v652, %v640
      %v655 = vadd.f32 %v653, 0.2548296
      %v656 = vadd.f32 %v654, 0.2548296
      %v657 = vmul.f32 %v655, %v638
      %v658 = vmul.f32 %v656, %v640
      %v659 = vmul.f32 %v631, %v631
      %v660 = vmul.f32 %v632, %v632
      %v661 = vsub.f32 0.0, %v659
      %v662 = vsub.f32 0.0, %v660
      %v663 = vmul.f32 %v661, 1.442695
      %v664 = vpow.pop %v663
      %v665 = vmul.f32 %v662, 1.442695
      %v666 = vpow.pop %v665
      %v667 = vmul.f32 %v657, %v664
      %v668 = vmul.f32 %v658, %v666
      %v669 = vsub.f32 1.0, %v667
      %v670 = vsub.f32 1.0, %v668
      %vm671 = vcmp.ge.f32.partialorder %v629, 0.0
      %vm672 = vcmp.ge.f32.partialorder %v630, 0.0
      %v673 = vsub.f32 0.0, %v669
      %v674 = vsub.f32 0.0, %v670
      %v675 = vsel %vm671, %v669, %v673
      %v676 = vsel %vm672, %v670, %v674
      %v677 = vadd.f32 %v675, 1.0
      %v678 = vadd.f32 %v676, 1.0
      %v679 = vmul.f32 %v627, %v677
      %v680 = vmul.f32 %v628, %v678
      %682 = vset.pattern.permute.xlu0 4
      %683 = vperm.xlu0 %682, %v455
      %v684 = vpop.permute.xlu0 %683
      %687 = vset.pattern.permute.xlu0 4
      %688 = vperm.xlu0 %687, %v456
      %v689 = vpop.permute.xlu0 %688
      %v691 = vmul.f32 %v684, %v617
      %v692 = vmul.f32 %v684, %v619
      %v693 = vmul.f32 %v689, %v623
      %v694 = vmul.f32 %v689, %v625
      %695 = vrot.lane.b32.xlu0 %v617, 17
      %v696 = vpop.permute.xlu0 %695
      %697 = vrot.lane.b32.xlu0 %v623, 17
      %v698 = vpop.permute.xlu0 %697
      %699 = vrot.lane.b32.xlu0 %v619, 17
      %v700 = vpop.permute.xlu0 %699
      %701 = vrot.lane.b32.xlu0 %v625, 17
      %v702 = vpop.permute.xlu0 %701
      %v703 = vlaneseq
      %v704 = vand.u32 %v703, 127
      %vm705 = vcmp.lt.s32.totalorder %v704, 17
      %v706 = vsel %vm705, %v696, %v700
      %v707 = vsel %vm705, %v698, %v702
      %v708 = vsel %vm705, %v700, %v696
      %v709 = vsel %vm705, %v702, %v698
      %v710 = vlaneseq
      %v711 = vshrl.u32 %v710, 7
      %v712 = vsub.s32 0, %v711
      %v713 = vrot.slane %v459, %v712
      %v714 = vlaneseq
      %v715 = vshrl.u32 %v714, 7
      %v716 = vsub.s32 0, %v715
      %v717 = vrot.slane %v460, %v716
      %v718 = vmul.f32 %v708, %v713
      %v719 = vmul.f32 %v706, %v717
      %v720 = vmul.f32 %v709, %v713
      %v721 = vmul.f32 %v707, %v717
      %722 = vset.pattern.permute.xlu0 0
      %723 = vperm.xlu0 %722, %v455
      %v724 = vpop.permute.xlu0 %723
      %726 = vset.pattern.permute.xlu0 0
      %727 = vperm.xlu0 %726, %v456
      %v728 = vpop.permute.xlu0 %727
      %v730 = vmul.f32 %v724, %v718
      %v731 = vmul.f32 %v724, %v719
      %v732 = vmul.f32 %v728, %v720
      %v733 = vmul.f32 %v728, %v721
      %v734 = vadd.f32 %v691, %v730
      %v735 = vadd.f32 %v692, %v731
      %v736 = vadd.f32 %v693, %v732
      %v737 = vadd.f32 %v694, %v733
      %738 = vrot.lane.b32.xlu0 %v617, 16
      %v739 = vpop.permute.xlu0 %738
      %740 = vrot.lane.b32.xlu0 %v623, 16
      %v741 = vpop.permute.xlu0 %740
      %742 = vrot.lane.b32.xlu0 %v619, 16
      %v743 = vpop.permute.xlu0 %742
      %744 = vrot.lane.b32.xlu0 %v625, 16
      %v745 = vpop.permute.xlu0 %744
      %vm746 = vcmp.lt.s32.totalorder %v704, 16
      %v747 = vsel %vm746, %v739, %v743
      %v748 = vsel %vm746, %v741, %v745
      %v749 = vsel %vm746, %v743, %v739
      %v750 = vsel %vm746, %v745, %v741
      %v751 = vlaneseq
      %v752 = vshrl.u32 %v751, 7
      %v753 = vsub.s32 1, %v752
      %v754 = vrot.slane %v459, %v753
      %v755 = vlaneseq
      %v756 = vshrl.u32 %v755, 7
      %v757 = vsub.s32 1, %v756
      %v758 = vrot.slane %v460, %v757
      %v759 = vmul.f32 %v749, %v754
      %v760 = vmul.f32 %v747, %v758
      %v761 = vmul.f32 %v750, %v754
      %v762 = vmul.f32 %v748, %v758
      %763 = vset.pattern.permute.xlu0 1
      %764 = vperm.xlu0 %763, %v455
      %v765 = vpop.permute.xlu0 %764
      %767 = vset.pattern.permute.xlu0 1
      %768 = vperm.xlu0 %767, %v456
      %v769 = vpop.permute.xlu0 %768
      %v771 = vmul.f32 %v765, %v759
      %v772 = vmul.f32 %v765, %v760
      %v773 = vmul.f32 %v769, %v761
      %v774 = vmul.f32 %v769, %v762
      %v775 = vadd.f32 %v734, %v771
      %v776 = vadd.f32 %v735, %v772
      %v777 = vadd.f32 %v736, %v773
      %v778 = vadd.f32 %v737, %v774
      %779 = vrot.lane.b32.xlu0 %v617, 15
      %v780 = vpop.permute.xlu0 %779
      %781 = vrot.lane.b32.xlu0 %v623, 15
      %v782 = vpop.permute.xlu0 %781
      %783 = vrot.lane.b32.xlu0 %v619, 15
      %v784 = vpop.permute.xlu0 %783
      %785 = vrot.lane.b32.xlu0 %v625, 15
      %v786 = vpop.permute.xlu0 %785
      %vm787 = vcmp.lt.s32.totalorder %v704, 15
      %v788 = vsel %vm787, %v780, %v784
      %v789 = vsel %vm787, %v782, %v786
      %v790 = vsel %vm787, %v784, %v780
      %v791 = vsel %vm787, %v786, %v782
      %v792 = vlaneseq
      %v793 = vshrl.u32 %v792, 7
      %v794 = vsub.s32 2, %v793
      %v795 = vrot.slane %v459, %v794
      %v796 = vlaneseq
      %v797 = vshrl.u32 %v796, 7
      %v798 = vsub.s32 2, %v797
      %v799 = vrot.slane %v460, %v798
      %v800 = vmul.f32 %v790, %v795
      %v801 = vmul.f32 %v788, %v799
      %v802 = vmul.f32 %v791, %v795
      %v803 = vmul.f32 %v789, %v799
      %804 = vset.pattern.permute.xlu0 2
      %805 = vperm.xlu0 %804, %v455
      %v806 = vpop.permute.xlu0 %805
      %808 = vset.pattern.permute.xlu0 2
      %809 = vperm.xlu0 %808, %v456
      %v810 = vpop.permute.xlu0 %809
      %v812 = vmul.f32 %v806, %v800
      %v813 = vmul.f32 %v806, %v801
      %v814 = vmul.f32 %v810, %v802
      %v815 = vmul.f32 %v810, %v803
      %v816 = vadd.f32 %v775, %v812
      %v817 = vadd.f32 %v776, %v813
      %v818 = vadd.f32 %v777, %v814
      %v819 = vadd.f32 %v778, %v815
      %820 = vrot.lane.b32.xlu0 %v617, 1
      %v821 = vpop.permute.xlu0 %820
      %822 = vrot.lane.b32.xlu0 %v623, 1
      %v823 = vpop.permute.xlu0 %822
      %824 = vrot.lane.b32.xlu0 %v619, 1
      %v825 = vpop.permute.xlu0 %824
      %826 = vrot.lane.b32.xlu0 %v625, 1
      %v827 = vpop.permute.xlu0 %826
      %vm828 = vcmp.lt.s32.totalorder %v704, 1
      %v829 = vsel %vm828, %v821, %v825
      %v830 = vsel %vm828, %v823, %v827
      %v831 = vsel %vm828, %v825, %v821
      %v832 = vsel %vm828, %v827, %v823
      %v833 = vlaneseq
      %v834 = vshrl.u32 %v833, 7
      %v835 = vsub.s32 3, %v834
      %v836 = vrot.slane %v459, %v835
      %v837 = vlaneseq
      %v838 = vshrl.u32 %v837, 7
      %v839 = vsub.s32 3, %v838
      %v840 = vrot.slane %v460, %v839
      %v841 = vmul.f32 %v831, %v836
      %v842 = vmul.f32 %v829, %v840
      %v843 = vmul.f32 %v832, %v836
      %v844 = vmul.f32 %v830, %v840
      %845 = vset.pattern.permute.xlu0 3
      %846 = vperm.xlu0 %845, %v455
      %v847 = vpop.permute.xlu0 %846
      %849 = vset.pattern.permute.xlu0 3
      %850 = vperm.xlu0 %849, %v456
      %v851 = vpop.permute.xlu0 %850
      %v853 = vmul.f32 %v847, %v841
      %v854 = vmul.f32 %v847, %v842
      %v855 = vmul.f32 %v851, %v843
      %v856 = vmul.f32 %v851, %v844
      %v857 = vadd.f32 %v816, %v853
      %v858 = vadd.f32 %v817, %v854
      %v859 = vadd.f32 %v818, %v855
      %v860 = vadd.f32 %v819, %v856
      %861 = vrot.lane.b32.xlu0 %v617, 127
      %v862 = vpop.permute.xlu0 %861
      %863 = vrot.lane.b32.xlu0 %v623, 127
      %v864 = vpop.permute.xlu0 %863
      %865 = vrot.lane.b32.xlu0 %v619, 127
      %v866 = vpop.permute.xlu0 %865
      %867 = vrot.lane.b32.xlu0 %v625, 127
      %v868 = vpop.permute.xlu0 %867
      %vm869 = vcmp.lt.s32.totalorder %v704, 127
      %v870 = vsel %vm869, %v862, %v866
      %v871 = vsel %vm869, %v864, %v868
      %v872 = vsel %vm869, %v866, %v862
      %v873 = vsel %vm869, %v868, %v864
      %v874 = vlaneseq
      %v875 = vshrl.u32 %v874, 7
      %v876 = vsub.s32 4, %v875
      %v877 = vrot.slane %v459, %v876
      %v878 = vlaneseq
      %v879 = vshrl.u32 %v878, 7
      %v880 = vsub.s32 4, %v879
      %v881 = vrot.slane %v460, %v880
      %v882 = vmul.f32 %v870, %v877
      %v883 = vmul.f32 %v872, %v881
      %v884 = vmul.f32 %v871, %v877
      %v885 = vmul.f32 %v873, %v881
      %886 = vset.pattern.permute.xlu0 5
      %887 = vperm.xlu0 %886, %v455
      %v888 = vpop.permute.xlu0 %887
      %890 = vset.pattern.permute.xlu0 5
      %891 = vperm.xlu0 %890, %v456
      %v892 = vpop.permute.xlu0 %891
      %v894 = vmul.f32 %v888, %v882
      %v895 = vmul.f32 %v888, %v883
      %v896 = vmul.f32 %v892, %v884
      %v897 = vmul.f32 %v892, %v885
      %v898 = vadd.f32 %v857, %v894
      %v899 = vadd.f32 %v858, %v895
      %v900 = vadd.f32 %v859, %v896
      %v901 = vadd.f32 %v860, %v897
      %902 = vrot.lane.b32.xlu0 %v617, 113
      %v903 = vpop.permute.xlu0 %902
      %904 = vrot.lane.b32.xlu0 %v623, 113
      %v905 = vpop.permute.xlu0 %904
      %906 = vrot.lane.b32.xlu0 %v619, 113
      %v907 = vpop.permute.xlu0 %906
      %908 = vrot.lane.b32.xlu0 %v625, 113
      %v909 = vpop.permute.xlu0 %908
      %vm910 = vcmp.lt.s32.totalorder %v704, 113
      %v911 = vsel %vm910, %v903, %v907
      %v912 = vsel %vm910, %v905, %v909
      %v913 = vsel %vm910, %v907, %v903
      %v914 = vsel %vm910, %v909, %v905
      %v915 = vlaneseq
      %v916 = vshrl.u32 %v915, 7
      %v917 = vsub.s32 5, %v916
      %v918 = vrot.slane %v459, %v917
      %v919 = vlaneseq
      %v920 = vshrl.u32 %v919, 7
      %v921 = vsub.s32 5, %v920
      %v922 = vrot.slane %v460, %v921
      %v923 = vmul.f32 %v911, %v918
      %v924 = vmul.f32 %v913, %v922
      %v925 = vmul.f32 %v912, %v918
      %v926 = vmul.f32 %v914, %v922
      %927 = vset.pattern.permute.xlu0 6
      %928 = vperm.xlu0 %927, %v455
      %v929 = vpop.permute.xlu0 %928
      %931 = vset.pattern.permute.xlu0 6
      %932 = vperm.xlu0 %931, %v456
      %v933 = vpop.permute.xlu0 %932
      %v935 = vmul.f32 %v929, %v923
      %v936 = vmul.f32 %v929, %v924
      %v937 = vmul.f32 %v933, %v925
      %v938 = vmul.f32 %v933, %v926
      %v939 = vadd.f32 %v898, %v935
      %v940 = vadd.f32 %v899, %v936
      %v941 = vadd.f32 %v900, %v937
      %v942 = vadd.f32 %v901, %v938
      %943 = vrot.lane.b32.xlu0 %v617, 112
      %v944 = vpop.permute.xlu0 %943
      %945 = vrot.lane.b32.xlu0 %v623, 112
      %v946 = vpop.permute.xlu0 %945
      %947 = vrot.lane.b32.xlu0 %v619, 112
      %v948 = vpop.permute.xlu0 %947
      %949 = vrot.lane.b32.xlu0 %v625, 112
      %v950 = vpop.permute.xlu0 %949
      %vm951 = vcmp.lt.s32.totalorder %v704, 112
      %v952 = vsel %vm951, %v944, %v948
      %v953 = vsel %vm951, %v946, %v950
      %v954 = vsel %vm951, %v948, %v944
      %v955 = vsel %vm951, %v950, %v946
      %v956 = vlaneseq
      %v957 = vshrl.u32 %v956, 7
      %v958 = vsub.s32 6, %v957
      %v959 = vrot.slane %v459, %v958
      %v960 = vlaneseq
      %v961 = vshrl.u32 %v960, 7
      %v962 = vsub.s32 6, %v961
      %v963 = vrot.slane %v460, %v962
      %v964 = vmul.f32 %v952, %v959
      %v965 = vmul.f32 %v954, %v963
      %v966 = vmul.f32 %v953, %v959
      %v967 = vmul.f32 %v955, %v963
      %968 = vset.pattern.permute.xlu0 7
      %969 = vperm.xlu0 %968, %v455
      %v970 = vpop.permute.xlu0 %969
      %972 = vset.pattern.permute.xlu0 7
      %973 = vperm.xlu0 %972, %v456
      %v974 = vpop.permute.xlu0 %973
      %v976 = vmul.f32 %v970, %v964
      %v977 = vmul.f32 %v970, %v965
      %v978 = vmul.f32 %v974, %v966
      %v979 = vmul.f32 %v974, %v967
      %v980 = vadd.f32 %v939, %v976
      %v981 = vadd.f32 %v940, %v977
      %v982 = vadd.f32 %v941, %v978
      %v983 = vadd.f32 %v942, %v979
      %984 = vrot.lane.b32.xlu0 %v617, 111
      %v985 = vpop.permute.xlu0 %984
      %986 = vrot.lane.b32.xlu0 %v623, 111
      %v987 = vpop.permute.xlu0 %986
      %988 = vrot.lane.b32.xlu0 %v619, 111
      %v989 = vpop.permute.xlu0 %988
      %990 = vrot.lane.b32.xlu0 %v625, 111
      %v991 = vpop.permute.xlu0 %990
      %vm992 = vcmp.lt.s32.totalorder %v704, 111
      %v993 = vsel %vm992, %v985, %v989
      %v994 = vsel %vm992, %v987, %v991
      %v995 = vsel %vm992, %v989, %v985
      %v996 = vsel %vm992, %v991, %v987
      %v997 = vlaneseq
      %v998 = vshrl.u32 %v997, 7
      %v999 = vsub.s32 7, %v998
      %v1000 = vrot.slane %v459, %v999
      %v1001 = vlaneseq
      %v1002 = vshrl.u32 %v1001, 7
      %v1003 = vsub.s32 7, %v1002
      %v1004 = vrot.slane %v460, %v1003
      %v1005 = vmul.f32 %v993, %v1000
      %v1006 = vmul.f32 %v995, %v1004
      %v1007 = vmul.f32 %v994, %v1000
      %v1008 = vmul.f32 %v996, %v1004
      %1009 = vset.pattern.permute.xlu0 8
      %1010 = vperm.xlu0 %1009, %v455
      %v1011 = vpop.permute.xlu0 %1010
      %1013 = vset.pattern.permute.xlu0 8
      %1014 = vperm.xlu0 %1013, %v456
      %v1015 = vpop.permute.xlu0 %1014
      %v1017 = vmul.f32 %v1011, %v1005
      %v1018 = vmul.f32 %v1011, %v1006
      %v1019 = vmul.f32 %v1015, %v1007
      %v1020 = vmul.f32 %v1015, %v1008
      %v1021 = vadd.f32 %v980, %v1017
      %v1022 = vadd.f32 %v981, %v1018
      %v1023 = vadd.f32 %v982, %v1019
      %v1024 = vadd.f32 %v983, %v1020
      %1026 = vset.pattern.permute.xlu0 0
      %1027 = vperm.xlu0 %1026, %v457
      %v1028 = vpop.permute.xlu0 %1027
      %1031 = vset.pattern.permute.xlu0 0
      %1032 = vperm.xlu0 %1031, %v458
      %v1033 = vpop.permute.xlu0 %1032
      %v1035 = vadd.f32 %v1021, %v1028
      %v1036 = vadd.f32 %v1022, %v1028
      %v1037 = vadd.f32 %v1023, %v1033
      %v1038 = vadd.f32 %v1024, %v1033
      %v1039 = vld [vmem:[%s438] sm:$0xff]
      %v1040 = vld [vmem:[%s438 + $0x8] sm:$0xff]
      %v1041 = vmul.f32 %v1039, %v1039
      %v1042 = vmul.f32 %v1040, %v1040
      %v1043 = vadd.f32 %v1041, %v1042
      %1044 = vadd.xlane.f32.xlu0 %v1043
      %v1045 = vpop.xlane.xlu0 %1044
      %v1046 = vmax.f32 %v1045, 1e-24
      %v1047 = vrsqrt.pop %v1046
      %v1048 = vmul.f32 %v1039, %v1047
      %v1049 = vmul.f32 %v1040, %v1047
      %v1050 = vmul.f32 %v1035, %v1035
      %v1051 = vmul.f32 %v1036, %v1036
      %v1052 = vadd.f32 %v1050, %v1051
      %1053 = vadd.xlane.f32.xlu0 %v1052
      %v1054 = vpop.xlane.xlu0 %1053
      %v1055 = vmax.f32 %v1054, 1e-24
      %v1056 = vrsqrt.pop %v1055
      %v1057 = vmul.f32 %v1035, %v1056
      %v1058 = vmul.f32 %v1036, %v1056
      %1059 = vmatprep.subr.mxu0 0.0
      %1060 = vmatpush1.xpose.msra.mxu0 0.0
      %1061 = vmatprep.subr.mxu0 0.0
      %1062 = vmatpush1.xpose.msra.mxu0 0.0
      %1063 = vmatprep.subr.mxu0 0.0
      %1064 = vmatpush1.xpose.msra.mxu0 0.0
      %1065 = vmatprep.subr.mxu0 0.0
      %1066 = vmatpush1.xpose.msra.mxu0 0.0
      %1067 = vmatprep.subr.mxu0 0.0
      %1068 = vmatpush1.xpose.msra.mxu0 0.0
      %1069 = vmatprep.subr.mxu0 0.0
      %1070 = vmatpush1.xpose.msra.mxu0 0.0
      %1071 = vmatprep.subr.mxu0 0.0
      %1072 = vmatpush1.xpose.msra.mxu0 0.0
      %1073 = vmatprep.subr.mxu0 0.0
      %1074 = vmatpush1.xpose.msra.mxu0 0.0
      %1075 = vmatprep.subr.mxu0 0.0
      %1076 = vmatpush1.xpose.msra.mxu0 0.0
      %1077 = vmatprep.subr.mxu0 0.0
      %1078 = vmatpush1.xpose.msra.mxu0 0.0
      %1079 = vmatprep.subr.mxu0 0.0
      %1080 = vmatpush1.xpose.msra.mxu0 0.0
      %1081 = vmatprep.subr.mxu0 0.0
      %1082 = vmatpush1.xpose.msra.mxu0 0.0
      %1083 = vmatprep.subr.mxu0 0.0
      %1084 = vmatpush1.xpose.msra.mxu0 0.0
      %1085 = vmatprep.subr.mxu0 0.0
      %1086 = vmatpush1.xpose.msra.mxu0 0.0
      %1087 = vmatprep.subr.mxu0 0.0
      %1088 = vmatpush1.xpose.msra.mxu0 0.0
      %1089 = vmatprep.subr.mxu0 %v1058
      %1090 = vmatpush1.xpose.msra.mxu0 %v1057
      %1091 = vmatprep.subr.mxu0 0.0
      %1092 = vmatpush2.xpose.msra.mxu0 0.0
      %1093 = vmatprep.subr.mxu0 0.0
      %1094 = vmatpush2.xpose.msra.mxu0 0.0
      %1095 = vmatprep.subr.mxu0 0.0
      %1096 = vmatpush2.xpose.msra.mxu0 0.0
      %1097 = vmatprep.subr.mxu0 0.0
      %1098 = vmatpush2.xpose.msra.mxu0 0.0
      %1099 = vmatprep.subr.mxu0 0.0
      %1100 = vmatpush2.xpose.msra.mxu0 0.0
      %1101 = vmatprep.subr.mxu0 0.0
      %1102 = vmatpush2.xpose.msra.mxu0 0.0
      %1103 = vmatprep.subr.mxu0 0.0
      %1104 = vmatpush2.xpose.msra.mxu0 0.0
      %1105 = vmatprep.subr.mxu0 0.0
      %1106 = vmatpush2.xpose.msra.mxu0 0.0
      %1107 = vmatprep.subr.mxu0 0.0
      %1108 = vmatpush2.xpose.msra.mxu0 0.0
      %1109 = vmatprep.subr.mxu0 0.0
      %1110 = vmatpush2.xpose.msra.mxu0 0.0
      %1111 = vmatprep.subr.mxu0 0.0
      %1112 = vmatpush2.xpose.msra.mxu0 0.0
      %1113 = vmatprep.subr.mxu0 0.0
      %1114 = vmatpush2.xpose.msra.mxu0 0.0
      %1115 = vmatprep.subr.mxu0 0.0
      %1116 = vmatpush2.xpose.msra.mxu0 0.0
      %1117 = vmatprep.subr.mxu0 0.0
      %1118 = vmatpush2.xpose.msra.mxu0 0.0
      %1119 = vmatprep.subr.mxu0 0.0
      %1120 = vmatpush2.xpose.msra.mxu0 0.0
      %1121 = vmatprep.subr.mxu0 0.0
      %1122 = vmatpush2.xpose.msra.mxu0 0.0
      %1123 = vmatprep.mubr.f32.mxu0 %v1049
      %1124 = vmatmul.mubr.f32.gmra.mxu0 %v1048
      %v1125 = vpop.f32.mrf.mxu0
      %v1126 = vadd.f32 0.0, %v1125
      %v1127 = vpop.f32.mrf.mxu0
      %1128 = vdwg.mxu0
      %v1129 = vmul.f32 %v1126, %v461
      %v1130 = vmax.f32 %v1129, 0.0
      %v1132 = vsel %vm534, %v1130, 0
      %1134 = vmatprep.subr.mxu0 0.0
      %1135 = vmatpush1.msra.mxu0 0.0
      %1136 = vmatprep.subr.mxu0 0.0
      %1137 = vmatpush1.msra.mxu0 0.0
      %1138 = vmatprep.subr.mxu0 0.0
      %1139 = vmatpush1.msra.mxu0 0.0
      %1140 = vmatprep.subr.mxu0 0.0
      %1141 = vmatpush1.msra.mxu0 0.0
      %1142 = vmatprep.subr.mxu0 0.0
      %1143 = vmatpush1.msra.mxu0 0.0
      %1144 = vmatprep.subr.mxu0 0.0
      %1145 = vmatpush1.msra.mxu0 0.0
      %1146 = vmatprep.subr.mxu0 0.0
      %1147 = vmatpush1.msra.mxu0 0.0
      %1148 = vmatprep.subr.mxu0 0.0
      %1149 = vmatpush1.msra.mxu0 0.0
      %1150 = vmatprep.subr.mxu0 0.0
      %1151 = vmatpush1.msra.mxu0 0.0
      %1152 = vmatprep.subr.mxu0 0.0
      %1153 = vmatpush1.msra.mxu0 0.0
      %1154 = vmatprep.subr.mxu0 0.0
      %1155 = vmatpush1.msra.mxu0 0.0
      %1156 = vmatprep.subr.mxu0 0.0
      %1157 = vmatpush1.msra.mxu0 0.0
      %1158 = vmatprep.subr.mxu0 0.0
      %1159 = vmatpush1.msra.mxu0 0.0
      %1160 = vmatprep.subr.mxu0 0.0
      %1161 = vmatpush1.msra.mxu0 0.0
      %1162 = vmatprep.subr.mxu0 0.0
      %1163 = vmatpush1.msra.mxu0 0.0
      %1164 = vmatprep.subr.mxu0 %v1038
      %1165 = vmatpush1.msra.mxu0 %v1037
      %1166 = vmatprep.subr.mxu0 0.0
      %1167 = vmatpush2.msra.mxu0 0.0
      %1168 = vmatprep.subr.mxu0 0.0
      %1169 = vmatpush2.msra.mxu0 0.0
      %1170 = vmatprep.subr.mxu0 0.0
      %1171 = vmatpush2.msra.mxu0 0.0
      %1172 = vmatprep.subr.mxu0 0.0
      %1173 = vmatpush2.msra.mxu0 0.0
      %1174 = vmatprep.subr.mxu0 0.0
      %1175 = vmatpush2.msra.mxu0 0.0
      %1176 = vmatprep.subr.mxu0 0.0
      %1177 = vmatpush2.msra.mxu0 0.0
      %1178 = vmatprep.subr.mxu0 0.0
      %1179 = vmatpush2.msra.mxu0 0.0
      %1180 = vmatprep.subr.mxu0 0.0
      %1181 = vmatpush2.msra.mxu0 0.0
      %1182 = vmatprep.subr.mxu0 0.0
      %1183 = vmatpush2.msra.mxu0 0.0
      %1184 = vmatprep.subr.mxu0 0.0
      %1185 = vmatpush2.msra.mxu0 0.0
      %1186 = vmatprep.subr.mxu0 0.0
      %1187 = vmatpush2.msra.mxu0 0.0
      %1188 = vmatprep.subr.mxu0 0.0
      %1189 = vmatpush2.msra.mxu0 0.0
      %1190 = vmatprep.subr.mxu0 0.0
      %1191 = vmatpush2.msra.mxu0 0.0
      %1192 = vmatprep.subr.mxu0 0.0
      %1193 = vmatpush2.msra.mxu0 0.0
      %1194 = vmatprep.subr.mxu0 0.0
      %1195 = vmatpush2.msra.mxu0 0.0
      %1196 = vmatprep.subr.mxu0 0.0
      %1197 = vmatpush2.msra.mxu0 0.0
      %1198 = vmatprep.mubr.f32.mxu0 0.0
      %1199 = vmatmul.mubr.f32.gmra.mxu0 %v1132
      %v1200 = vpop.f32.mrf.mxu0
      %v1201 = vadd.f32 0.0, %v1200
      %v1202 = vpop.f32.mrf.mxu0
      %v1203 = vadd.f32 0.0, %v1202
      %1204 = vdwg.mxu0
      %v1205 = vmul.f32 %v1201, %v679
      %v1206 = vmul.f32 %v1203, %v680
      %1208 = vset.pattern.permute.xlu0 0
      %1209 = vperm.xlu0 %1208, %v463
      %v1210 = vpop.permute.xlu0 %1209
      %v1213 = vsel %vm534, %v462, 0
      %1215 = vmatprep.subr.mxu0 0.0
      %1216 = vmatpush1.msra.mxu0 0.0
      %1217 = vmatprep.subr.mxu0 0.0
      %1218 = vmatpush1.msra.mxu0 0.0
      %1219 = vmatprep.subr.mxu0 0.0
      %1220 = vmatpush1.msra.mxu0 0.0
      %1221 = vmatprep.subr.mxu0 0.0
      %1222 = vmatpush1.msra.mxu0 0.0
      %1223 = vmatprep.subr.mxu0 0.0
      %1224 = vmatpush1.msra.mxu0 0.0
      %1225 = vmatprep.subr.mxu0 0.0
      %1226 = vmatpush1.msra.mxu0 0.0
      %1227 = vmatprep.subr.mxu0 0.0
      %1228 = vmatpush1.msra.mxu0 0.0
      %1229 = vmatprep.subr.mxu0 0.0
      %1230 = vmatpush1.msra.mxu0 0.0
      %1231 = vmatprep.subr.mxu0 0.0
      %1232 = vmatpush1.msra.mxu0 0.0
      %1233 = vmatprep.subr.mxu0 0.0
      %1234 = vmatpush1.msra.mxu0 0.0
      %1235 = vmatprep.subr.mxu0 0.0
      %1236 = vmatpush1.msra.mxu0 0.0
      %1237 = vmatprep.subr.mxu0 0.0
      %1238 = vmatpush1.msra.mxu0 0.0
      %1239 = vmatprep.subr.mxu0 0.0
      %1240 = vmatpush1.msra.mxu0 0.0
      %1241 = vmatprep.subr.mxu0 0.0
      %1242 = vmatpush1.msra.mxu0 0.0
      %1243 = vmatprep.subr.mxu0 0.0
      %1244 = vmatpush1.msra.mxu0 0.0
      %1245 = vmatprep.subr.mxu0 %v1206
      %1246 = vmatpush1.msra.mxu0 %v1205
      %1247 = vmatprep.subr.mxu0 0.0
      %1248 = vmatpush2.msra.mxu0 0.0
      %1249 = vmatprep.subr.mxu0 0.0
      %1250 = vmatpush2.msra.mxu0 0.0
      %1251 = vmatprep.subr.mxu0 0.0
      %1252 = vmatpush2.msra.mxu0 0.0
      %1253 = vmatprep.subr.mxu0 0.0
      %1254 = vmatpush2.msra.mxu0 0.0
      %1255 = vmatprep.subr.mxu0 0.0
      %1256 = vmatpush2.msra.mxu0 0.0
      %1257 = vmatprep.subr.mxu0 0.0
      %1258 = vmatpush2.msra.mxu0 0.0
      %1259 = vmatprep.subr.mxu0 0.0
      %1260 = vmatpush2.msra.mxu0 0.0
      %1261 = vmatprep.subr.mxu0 0.0
      %1262 = vmatpush2.msra.mxu0 0.0
      %1263 = vmatprep.subr.mxu0 0.0
      %1264 = vmatpush2.msra.mxu0 0.0
      %1265 = vmatprep.subr.mxu0 0.0
      %1266 = vmatpush2.msra.mxu0 0.0
      %1267 = vmatprep.subr.mxu0 0.0
      %1268 = vmatpush2.msra.mxu0 0.0
      %1269 = vmatprep.subr.mxu0 0.0
      %1270 = vmatpush2.msra.mxu0 0.0
      %1271 = vmatprep.subr.mxu0 0.0
      %1272 = vmatpush2.msra.mxu0 0.0
      %1273 = vmatprep.subr.mxu0 0.0
      %1274 = vmatpush2.msra.mxu0 0.0
      %1275 = vmatprep.subr.mxu0 0.0
      %1276 = vmatpush2.msra.mxu0 0.0
      %1277 = vmatprep.subr.mxu0 0.0
      %1278 = vmatpush2.msra.mxu0 0.0
      %1279 = vmatprep.mubr.f32.mxu0 0.0
      %1280 = vmatmul.mubr.f32.gmra.mxu0 %v1213
      %v1281 = vpop.f32.mrf.mxu0
      %v1282 = vadd.f32 %v1210, %v1281
      %v1283 = vpop.f32.mrf.mxu0
      %v1284 = vadd.f32 %v1210, %v1283
      %1285 = vdwg.mxu0
      %1286 = vst [vmem:[%s445] sm:$0xff] %v1282
      %1287 = vst [vmem:[%s445 + $0x8] sm:$0xff] %v1284
      %s1288 = scalar_lea.vmem %s431, 16
      %v1289 = vld [vmem:[%s1288] sm:$0xff]
      %v1290 = vld [vmem:[%s1288 + $0x8] sm:$0xff]
      %v1291 = vrot.slane %v1289, 4
      %v1292 = vadd.f32 %v1289, %v1291
      %v1293 = vrot.slane %v1292, 2
      %v1294 = vadd.f32 %v1292, %v1293
      %v1295 = vrot.slane %v1294, 1
      %v1296 = vadd.f32 %v1294, %v1295
      %v1297 = vrot.slane %v1290, 4
      %v1298 = vadd.f32 %v1290, %v1297
      %v1299 = vrot.slane %v1298, 2
      %v1300 = vadd.f32 %v1298, %v1299
      %v1301 = vrot.slane %v1300, 1
      %v1302 = vadd.f32 %v1300, %v1301
      %v1303 = vmul.f32 %v1296, %v478
      %v1304 = vmul.f32 %v1302, %v478
      %v1305 = vsub.f32 %v1289, %v1303
      %v1306 = vsub.f32 %v1290, %v1304
      %v1307 = vmul.f32 %v1305, %v1305
      %v1308 = vmul.f32 %v1306, %v1306
      %v1309 = vrot.slane %v1307, 4
      %v1310 = vadd.f32 %v1307, %v1309
      %v1311 = vrot.slane %v1310, 2
      %v1312 = vadd.f32 %v1310, %v1311
      %v1313 = vrot.slane %v1312, 1
      %v1314 = vadd.f32 %v1312, %v1313
      %v1315 = vrot.slane %v1308, 4
      %v1316 = vadd.f32 %v1308, %v1315
      %v1317 = vrot.slane %v1316, 2
      %v1318 = vadd.f32 %v1316, %v1317
      %v1319 = vrot.slane %v1318, 1
      %v1320 = vadd.f32 %v1318, %v1319
      %v1321 = vmul.f32 %v1314, %v478
      %v1322 = vmul.f32 %v1320, %v478
      %v1323 = vadd.f32 %v1321, 1e-05
      %v1324 = vadd.f32 %v1322, 1e-05
      %v1325 = vrsqrt.pop %v1323
      %v1326 = vrsqrt.pop %v1324
      %v1327 = vmul.f32 %v1305, %v1325
      %v1328 = vmul.f32 %v1306, %v1326
      %v1329 = vmul.f32 %v1327, %v508
      %v1330 = vmul.f32 %v1328, %v508
      %v1331 = vadd.f32 %v1329, %v515
      %v1332 = vadd.f32 %v1330, %v515
      %1333 = vmatprep.subr.mxu0 0.0
      %1334 = vmatpush1.msra.mxu0 0.0
      %1335 = vmatprep.subr.mxu0 0.0
      %1336 = vmatpush1.msra.mxu0 0.0
      %1337 = vmatprep.subr.mxu0 0.0
      %1338 = vmatpush1.msra.mxu0 0.0
      %1339 = vmatprep.subr.mxu0 0.0
      %1340 = vmatpush1.msra.mxu0 0.0
      %1341 = vmatprep.subr.mxu0 0.0
      %1342 = vmatpush1.msra.mxu0 0.0
      %1343 = vmatprep.subr.mxu0 0.0
      %1344 = vmatpush1.msra.mxu0 0.0
      %1345 = vmatprep.subr.mxu0 0.0
      %1346 = vmatpush1.msra.mxu0 0.0
      %1347 = vmatprep.subr.mxu0 0.0
      %1348 = vmatpush1.msra.mxu0 0.0
      %1349 = vmatprep.subr.mxu0 0.0
      %1350 = vmatpush1.msra.mxu0 0.0
      %1351 = vmatprep.subr.mxu0 0.0
      %1352 = vmatpush1.msra.mxu0 0.0
      %1353 = vmatprep.subr.mxu0 0.0
      %1354 = vmatpush1.msra.mxu0 0.0
      %1355 = vmatprep.subr.mxu0 0.0
      %1356 = vmatpush1.msra.mxu0 0.0
      %1357 = vmatprep.subr.mxu0 0.0
      %1358 = vmatpush1.msra.mxu0 0.0
      %1359 = vmatprep.subr.mxu0 0.0
      %1360 = vmatpush1.msra.mxu0 0.0
      %1361 = vmatprep.subr.mxu0 0.0
      %1362 = vmatpush1.msra.mxu0 0.0
      %1363 = vmatprep.subr.mxu0 %v1332
      %1364 = vmatpush1.msra.mxu0 %v1331
      %1365 = vmatprep.subr.mxu0 0.0
      %1366 = vmatpush2.msra.mxu0 0.0
      %1367 = vmatprep.subr.mxu0 0.0
      %1368 = vmatpush2.msra.mxu0 0.0
      %1369 = vmatprep.subr.mxu0 0.0
      %1370 = vmatpush2.msra.mxu0 0.0
      %1371 = vmatprep.subr.mxu0 0.0
      %1372 = vmatpush2.msra.mxu0 0.0
      %1373 = vmatprep.subr.mxu0 0.0
      %1374 = vmatpush2.msra.mxu0 0.0
      %1375 = vmatprep.subr.mxu0 0.0
      %1376 = vmatpush2.msra.mxu0 0.0
      %1377 = vmatprep.subr.mxu0 0.0
      %1378 = vmatpush2.msra.mxu0 0.0
      %1379 = vmatprep.subr.mxu0 0.0
      %1380 = vmatpush2.msra.mxu0 0.0
      %1381 = vmatprep.subr.mxu0 0.0
      %1382 = vmatpush2.msra.mxu0 0.0
      %1383 = vmatprep.subr.mxu0 0.0
      %1384 = vmatpush2.msra.mxu0 0.0
      %1385 = vmatprep.subr.mxu0 0.0
      %1386 = vmatpush2.msra.mxu0 0.0
      %1387 = vmatprep.subr.mxu0 0.0
      %1388 = vmatpush2.msra.mxu0 0.0
      %1389 = vmatprep.subr.mxu0 0.0
      %1390 = vmatpush2.msra.mxu0 0.0
      %1391 = vmatprep.subr.mxu0 0.0
      %1392 = vmatpush2.msra.mxu0 0.0
      %1393 = vmatprep.subr.mxu0 0.0
      %1394 = vmatpush2.msra.mxu0 0.0
      %1395 = vmatprep.subr.mxu0 0.0
      %1396 = vmatpush2.msra.mxu0 0.0
      %1397 = vmatprep.mubr.f32.mxu0 0.0
      %1398 = vmatmul.mubr.f32.gmra.mxu0 %v536
      %v1399 = vpop.f32.mrf.mxu0
      %v1400 = vadd.f32 %v522, %v1399
      %v1401 = vpop.f32.mrf.mxu0
      %v1402 = vadd.f32 %v522, %v1401
      %1403 = vmatprep.mubr.f32.mxu0 0.0
      %1404 = vmatmul.mubr.f32.gmra.mxu0 %v539
      %v1405 = vpop.f32.mrf.mxu0
      %v1406 = vadd.f32 %v527, %v1405
      %v1407 = vpop.f32.mrf.mxu0
      %v1408 = vadd.f32 %v527, %v1407
      %1409 = vmatprep.mubr.f32.mxu0 0.0
      %1410 = vmatmul.mubr.f32.gmra.mxu0 %v542
      %v1411 = vpop.f32.mrf.mxu0
      %v1412 = vadd.f32 %v532, %v1411
      %v1413 = vpop.f32.mrf.mxu0
      %v1414 = vadd.f32 %v532, %v1413
      %1415 = vdwg.mxu0
      %v1416 = vmul.f32 %v1400, 0.5
      %v1417 = vmul.f32 %v1402, 0.5
      %v1418 = vmul.f32 %v1400, 0.70710677
      %v1419 = vmul.f32 %v1402, 0.70710677
      %v1420 = vand.u32 2147483647, %v1418
      %v1421 = vand.u32 2147483647, %v1419
      %v1422 = vmul.f32 %v1420, 0.3275911
      %v1423 = vmul.f32 %v1421, 0.3275911
      %v1424 = vadd.f32 %v1422, 1.0
      %v1425 = vadd.f32 %v1423, 1.0
      %v1426 = vrcp.pop %v1424
      %v1427 = vmul.f32 1.0, %v1426
      %v1428 = vrcp.pop %v1425
      %v1429 = vmul.f32 1.0, %v1428
      %v1430 = vmul.f32 %v1427, 1.0614054
      %v1431 = vmul.f32 %v1429, 1.0614054
      %v1432 = vadd.f32 %v1430, -1.4531521
      %v1433 = vadd.f32 %v1431, -1.4531521
      %v1434 = vmul.f32 %v1432, %v1427
      %v1435 = vmul.f32 %v1433, %v1429
      %v1436 = vadd.f32 %v1434, 1.4214138
      %v1437 = vadd.f32 %v1435, 1.4214138
      %v1438 = vmul.f32 %v1436, %v1427
      %v1439 = vmul.f32 %v1437, %v1429
      %v1440 = vadd.f32 %v1438, -0.28449672
      %v1441 = vadd.f32 %v1439, -0.28449672
      %v1442 = vmul.f32 %v1440, %v1427
      %v1443 = vmul.f32 %v1441, %v1429
      %v1444 = vadd.f32 %v1442, 0.2548296
      %v1445 = vadd.f32 %v1443, 0.2548296
      %v1446 = vmul.f32 %v1444, %v1427
      %v1447 = vmul.f32 %v1445, %v1429
      %v1448 = vmul.f32 %v1420, %v1420
      %v1449 = vmul.f32 %v1421, %v1421
      %v1450 = vsub.f32 0.0, %v1448
      %v1451 = vsub.f32 0.0, %v1449
      %v1452 = vmul.f32 %v1450, 1.442695
      %v1453 = vpow.pop %v1452
      %v1454 = vmul.f32 %v1451, 1.442695
      %v1455 = vpow.pop %v1454
      %v1456 = vmul.f32 %v1446, %v1453
      %v1457 = vmul.f32 %v1447, %v1455
      %v1458 = vsub.f32 1.0, %v1456
      %v1459 = vsub.f32 1.0, %v1457
      %vm1460 = vcmp.ge.f32.partialorder %v1418, 0.0
      %vm1461 = vcmp.ge.f32.partialorder %v1419, 0.0
      %v1462 = vsub.f32 0.0, %v1458
      %v1463 = vsub.f32 0.0, %v1459
      %v1464 = vsel %vm1460, %v1458, %v1462
      %v1465 = vsel %vm1461, %v1459, %v1463
      %v1466 = vadd.f32 %v1464, 1.0
      %v1467 = vadd.f32 %v1465, 1.0
      %v1468 = vmul.f32 %v1416, %v1466
      %v1469 = vmul.f32 %v1417, %v1467
      %v1470 = vmul.f32 %v684, %v1406
      %v1471 = vmul.f32 %v684, %v1408
      %v1472 = vmul.f32 %v689, %v1412
      %v1473 = vmul.f32 %v689, %v1414
      %1474 = vrot.lane.b32.xlu0 %v1406, 17
      %v1475 = vpop.permute.xlu0 %1474
      %1476 = vrot.lane.b32.xlu0 %v1412, 17
      %v1477 = vpop.permute.xlu0 %1476
      %1478 = vrot.lane.b32.xlu0 %v1408, 17
      %v1479 = vpop.permute.xlu0 %1478
      %1480 = vrot.lane.b32.xlu0 %v1414, 17
      %v1481 = vpop.permute.xlu0 %1480
      %v1482 = vsel %vm705, %v1475, %v1479
      %v1483 = vsel %vm705, %v1477, %v1481
      %v1484 = vsel %vm705, %v1479, %v1475
      %v1485 = vsel %vm705, %v1481, %v1477
      %v1486 = vmul.f32 %v1484, %v713
      %v1487 = vmul.f32 %v1482, %v717
      %v1488 = vmul.f32 %v1485, %v713
      %v1489 = vmul.f32 %v1483, %v717
      %v1490 = vmul.f32 %v724, %v1486
      %v1491 = vmul.f32 %v724, %v1487
      %v1492 = vmul.f32 %v728, %v1488
      %v1493 = vmul.f32 %v728, %v1489
      %v1494 = vadd.f32 %v1470, %v1490
      %v1495 = vadd.f32 %v1471, %v1491
      %v1496 = vadd.f32 %v1472, %v1492
      %v1497 = vadd.f32 %v1473, %v1493
      %1498 = vrot.lane.b32.xlu0 %v1406, 16
      %v1499 = vpop.permute.xlu0 %1498
      %1500 = vrot.lane.b32.xlu0 %v1412, 16
      %v1501 = vpop.permute.xlu0 %1500
      %1502 = vrot.lane.b32.xlu0 %v1408, 16
      %v1503 = vpop.permute.xlu0 %1502
      %1504 = vrot.lane.b32.xlu0 %v1414, 16
      %v1505 = vpop.permute.xlu0 %1504
      %v1506 = vsel %vm746, %v1499, %v1503
      %v1507 = vsel %vm746, %v1501, %v1505
      %v1508 = vsel %vm746, %v1503, %v1499
      %v1509 = vsel %vm746, %v1505, %v1501
      %v1510 = vmul.f32 %v1508, %v754
      %v1511 = vmul.f32 %v1506, %v758
      %v1512 = vmul.f32 %v1509, %v754
      %v1513 = vmul.f32 %v1507, %v758
      %v1514 = vmul.f32 %v765, %v1510
      %v1515 = vmul.f32 %v765, %v1511
      %v1516 = vmul.f32 %v769, %v1512
      %v1517 = vmul.f32 %v769, %v1513
      %v1518 = vadd.f32 %v1494, %v1514
      %v1519 = vadd.f32 %v1495, %v1515
      %v1520 = vadd.f32 %v1496, %v1516
      %v1521 = vadd.f32 %v1497, %v1517
      %1522 = vrot.lane.b32.xlu0 %v1406, 15
      %v1523 = vpop.permute.xlu0 %1522
      %1524 = vrot.lane.b32.xlu0 %v1412, 15
      %v1525 = vpop.permute.xlu0 %1524
      %1526 = vrot.lane.b32.xlu0 %v1408, 15
      %v1527 = vpop.permute.xlu0 %1526
      %1528 = vrot.lane.b32.xlu0 %v1414, 15
      %v1529 = vpop.permute.xlu0 %1528
      %v1530 = vsel %vm787, %v1523, %v1527
      %v1531 = vsel %vm787, %v1525, %v1529
      %v1532 = vsel %vm787, %v1527, %v1523
      %v1533 = vsel %vm787, %v1529, %v1525
      %v1534 = vmul.f32 %v1532, %v795
      %v1535 = vmul.f32 %v1530, %v799
      %v1536 = vmul.f32 %v1533, %v795
      %v1537 = vmul.f32 %v1531, %v799
      %v1538 = vmul.f32 %v806, %v1534
      %v1539 = vmul.f32 %v806, %v1535
      %v1540 = vmul.f32 %v810, %v1536
      %v1541 = vmul.f32 %v810, %v1537
      %v1542 = vadd.f32 %v1518, %v1538
      %v1543 = vadd.f32 %v1519, %v1539
      %v1544 = vadd.f32 %v1520, %v1540
      %v1545 = vadd.f32 %v1521, %v1541
      %1546 = vrot.lane.b32.xlu0 %v1406, 1
      %v1547 = vpop.permute.xlu0 %1546
      %1548 = vrot.lane.b32.xlu0 %v1412, 1
      %v1549 = vpop.permute.xlu0 %1548
      %1550 = vrot.lane.b32.xlu0 %v1408, 1
      %v1551 = vpop.permute.xlu0 %1550
      %1552 = vrot.lane.b32.xlu0 %v1414, 1
      %v1553 = vpop.permute.xlu0 %1552
      %v1554 = vsel %vm828, %v1547, %v1551
      %v1555 = vsel %vm828, %v1549, %v1553
      %v1556 = vsel %vm828, %v1551, %v1547
      %v1557 = vsel %vm828, %v1553, %v1549
      %v1558 = vmul.f32 %v1556, %v836
      %v1559 = vmul.f32 %v1554, %v840
      %v1560 = vmul.f32 %v1557, %v836
      %v1561 = vmul.f32 %v1555, %v840
      %v1562 = vmul.f32 %v847, %v1558
      %v1563 = vmul.f32 %v847, %v1559
      %v1564 = vmul.f32 %v851, %v1560
      %v1565 = vmul.f32 %v851, %v1561
      %v1566 = vadd.f32 %v1542, %v1562
      %v1567 = vadd.f32 %v1543, %v1563
      %v1568 = vadd.f32 %v1544, %v1564
      %v1569 = vadd.f32 %v1545, %v1565
      %1570 = vrot.lane.b32.xlu0 %v1406, 127
      %v1571 = vpop.permute.xlu0 %1570
      %1572 = vrot.lane.b32.xlu0 %v1412, 127
      %v1573 = vpop.permute.xlu0 %1572
      %1574 = vrot.lane.b32.xlu0 %v1408, 127
      %v1575 = vpop.permute.xlu0 %1574
      %1576 = vrot.lane.b32.xlu0 %v1414, 127
      %v1577 = vpop.permute.xlu0 %1576
      %v1578 = vsel %vm869, %v1571, %v1575
      %v1579 = vsel %vm869, %v1573, %v1577
      %v1580 = vsel %vm869, %v1575, %v1571
      %v1581 = vsel %vm869, %v1577, %v1573
      %v1582 = vmul.f32 %v1578, %v877
      %v1583 = vmul.f32 %v1580, %v881
      %v1584 = vmul.f32 %v1579, %v877
      %v1585 = vmul.f32 %v1581, %v881
      %v1586 = vmul.f32 %v888, %v1582
      %v1587 = vmul.f32 %v888, %v1583
      %v1588 = vmul.f32 %v892, %v1584
      %v1589 = vmul.f32 %v892, %v1585
      %v1590 = vadd.f32 %v1566, %v1586
      %v1591 = vadd.f32 %v1567, %v1587
      %v1592 = vadd.f32 %v1568, %v1588
      %v1593 = vadd.f32 %v1569, %v1589
      %1594 = vrot.lane.b32.xlu0 %v1406, 113
      %v1595 = vpop.permute.xlu0 %1594
      %1596 = vrot.lane.b32.xlu0 %v1412, 113
      %v1597 = vpop.permute.xlu0 %1596
      %1598 = vrot.lane.b32.xlu0 %v1408, 113
      %v1599 = vpop.permute.xlu0 %1598
      %1600 = vrot.lane.b32.xlu0 %v1414, 113
      %v1601 = vpop.permute.xlu0 %1600
      %v1602 = vsel %vm910, %v1595, %v1599
      %v1603 = vsel %vm910, %v1597, %v1601
      %v1604 = vsel %vm910, %v1599, %v1595
      %v1605 = vsel %vm910, %v1601, %v1597
      %v1606 = vmul.f32 %v1602, %v918
      %v1607 = vmul.f32 %v1604, %v922
      %v1608 = vmul.f32 %v1603, %v918
      %v1609 = vmul.f32 %v1605, %v922
      %v1610 = vmul.f32 %v929, %v1606
      %v1611 = vmul.f32 %v929, %v1607
      %v1612 = vmul.f32 %v933, %v1608
      %v1613 = vmul.f32 %v933, %v1609
      %v1614 = vadd.f32 %v1590, %v1610
      %v1615 = vadd.f32 %v1591, %v1611
      %v1616 = vadd.f32 %v1592, %v1612
      %v1617 = vadd.f32 %v1593, %v1613
      %1618 = vrot.lane.b32.xlu0 %v1406, 112
      %v1619 = vpop.permute.xlu0 %1618
      %1620 = vrot.lane.b32.xlu0 %v1412, 112
      %v1621 = vpop.permute.xlu0 %1620
      %1622 = vrot.lane.b32.xlu0 %v1408, 112
      %v1623 = vpop.permute.xlu0 %1622
      %1624 = vrot.lane.b32.xlu0 %v1414, 112
      %v1625 = vpop.permute.xlu0 %1624
      %v1626 = vsel %vm951, %v1619, %v1623
      %v1627 = vsel %vm951, %v1621, %v1625
      %v1628 = vsel %vm951, %v1623, %v1619
      %v1629 = vsel %vm951, %v1625, %v1621
      %v1630 = vmul.f32 %v1626, %v959
      %v1631 = vmul.f32 %v1628, %v963
      %v1632 = vmul.f32 %v1627, %v959
      %v1633 = vmul.f32 %v1629, %v963
      %v1634 = vmul.f32 %v970, %v1630
      %v1635 = vmul.f32 %v970, %v1631
      %v1636 = vmul.f32 %v974, %v1632
      %v1637 = vmul.f32 %v974, %v1633
      %v1638 = vadd.f32 %v1614, %v1634
      %v1639 = vadd.f32 %v1615, %v1635
      %v1640 = vadd.f32 %v1616, %v1636
      %v1641 = vadd.f32 %v1617, %v1637
      %1642 = vrot.lane.b32.xlu0 %v1406, 111
      %v1643 = vpop.permute.xlu0 %1642
      %1644 = vrot.lane.b32.xlu0 %v1412, 111
      %v1645 = vpop.permute.xlu0 %1644
      %1646 = vrot.lane.b32.xlu0 %v1408, 111
      %v1647 = vpop.permute.xlu0 %1646
      %1648 = vrot.lane.b32.xlu0 %v1414, 111
      %v1649 = vpop.permute.xlu0 %1648
      %v1650 = vsel %vm992, %v1643, %v1647
      %v1651 = vsel %vm992, %v1645, %v1649
      %v1652 = vsel %vm992, %v1647, %v1643
      %v1653 = vsel %vm992, %v1649, %v1645
      %v1654 = vmul.f32 %v1650, %v1000
      %v1655 = vmul.f32 %v1652, %v1004
      %v1656 = vmul.f32 %v1651, %v1000
      %v1657 = vmul.f32 %v1653, %v1004
      %v1658 = vmul.f32 %v1011, %v1654
      %v1659 = vmul.f32 %v1011, %v1655
      %v1660 = vmul.f32 %v1015, %v1656
      %v1661 = vmul.f32 %v1015, %v1657
      %v1662 = vadd.f32 %v1638, %v1658
      %v1663 = vadd.f32 %v1639, %v1659
      %v1664 = vadd.f32 %v1640, %v1660
      %v1665 = vadd.f32 %v1641, %v1661
      %v1666 = vadd.f32 %v1662, %v1028
      %v1667 = vadd.f32 %v1663, %v1028
      %v1668 = vadd.f32 %v1664, %v1033
      %v1669 = vadd.f32 %v1665, %v1033
      %s1670 = scalar_lea.vmem %s438, 16
      %v1671 = vld [vmem:[%s1670] sm:$0xff]
      %v1672 = vld [vmem:[%s1670 + $0x8] sm:$0xff]
      %v1673 = vmul.f32 %v1671, %v1671
      %v1674 = vmul.f32 %v1672, %v1672
      %v1675 = vadd.f32 %v1673, %v1674
      %1676 = vadd.xlane.f32.xlu0 %v1675
      %v1677 = vpop.xlane.xlu0 %1676
      %v1678 = vmax.f32 %v1677, 1e-24
      %v1679 = vrsqrt.pop %v1678
      %v1680 = vmul.f32 %v1671, %v1679
      %v1681 = vmul.f32 %v1672, %v1679
      %v1682 = vmul.f32 %v1666, %v1666
      %v1683 = vmul.f32 %v1667, %v1667
      %v1684 = vadd.f32 %v1682, %v1683
      %1685 = vadd.xlane.f32.xlu0 %v1684
      %v1686 = vpop.xlane.xlu0 %1685
      %v1687 = vmax.f32 %v1686, 1e-24
      %v1688 = vrsqrt.pop %v1687
      %v1689 = vmul.f32 %v1666, %v1688
      %v1690 = vmul.f32 %v1667, %v1688
      %1691 = vmatprep.subr.mxu0 0.0
      %1692 = vmatpush1.xpose.msra.mxu0 0.0
      %1693 = vmatprep.subr.mxu0 0.0
      %1694 = vmatpush1.xpose.msra.mxu0 0.0
      %1695 = vmatprep.subr.mxu0 0.0
      %1696 = vmatpush1.xpose.msra.mxu0 0.0
      %1697 = vmatprep.subr.mxu0 0.0
      %1698 = vmatpush1.xpose.msra.mxu0 0.0
      %1699 = vmatprep.subr.mxu0 0.0
      %1700 = vmatpush1.xpose.msra.mxu0 0.0
      %1701 = vmatprep.subr.mxu0 0.0
      %1702 = vmatpush1.xpose.msra.mxu0 0.0
      %1703 = vmatprep.subr.mxu0 0.0
      %1704 = vmatpush1.xpose.msra.mxu0 0.0
      %1705 = vmatprep.subr.mxu0 0.0
      %1706 = vmatpush1.xpose.msra.mxu0 0.0
      %1707 = vmatprep.subr.mxu0 0.0
      %1708 = vmatpush1.xpose.msra.mxu0 0.0
      %1709 = vmatprep.subr.mxu0 0.0
      %1710 = vmatpush1.xpose.msra.mxu0 0.0
      %1711 = vmatprep.subr.mxu0 0.0
      %1712 = vmatpush1.xpose.msra.mxu0 0.0
      %1713 = vmatprep.subr.mxu0 0.0
      %1714 = vmatpush1.xpose.msra.mxu0 0.0
      %1715 = vmatprep.subr.mxu0 0.0
      %1716 = vmatpush1.xpose.msra.mxu0 0.0
      %1717 = vmatprep.subr.mxu0 0.0
      %1718 = vmatpush1.xpose.msra.mxu0 0.0
      %1719 = vmatprep.subr.mxu0 0.0
      %1720 = vmatpush1.xpose.msra.mxu0 0.0
      %1721 = vmatprep.subr.mxu0 %v1690
      %1722 = vmatpush1.xpose.msra.mxu0 %v1689
      %1723 = vmatprep.subr.mxu0 0.0
      %1724 = vmatpush2.xpose.msra.mxu0 0.0
      %1725 = vmatprep.subr.mxu0 0.0
      %1726 = vmatpush2.xpose.msra.mxu0 0.0
      %1727 = vmatprep.subr.mxu0 0.0
      %1728 = vmatpush2.xpose.msra.mxu0 0.0
      %1729 = vmatprep.subr.mxu0 0.0
      %1730 = vmatpush2.xpose.msra.mxu0 0.0
      %1731 = vmatprep.subr.mxu0 0.0
      %1732 = vmatpush2.xpose.msra.mxu0 0.0
      %1733 = vmatprep.subr.mxu0 0.0
      %1734 = vmatpush2.xpose.msra.mxu0 0.0
      %1735 = vmatprep.subr.mxu0 0.0
      %1736 = vmatpush2.xpose.msra.mxu0 0.0
      %1737 = vmatprep.subr.mxu0 0.0
      %1738 = vmatpush2.xpose.msra.mxu0 0.0
      %1739 = vmatprep.subr.mxu0 0.0
      %1740 = vmatpush2.xpose.msra.mxu0 0.0
      %1741 = vmatprep.subr.mxu0 0.0
      %1742 = vmatpush2.xpose.msra.mxu0 0.0
      %1743 = vmatprep.subr.mxu0 0.0
      %1744 = vmatpush2.xpose.msra.mxu0 0.0
      %1745 = vmatprep.subr.mxu0 0.0
      %1746 = vmatpush2.xpose.msra.mxu0 0.0
      %1747 = vmatprep.subr.mxu0 0.0
      %1748 = vmatpush2.xpose.msra.mxu0 0.0
      %1749 = vmatprep.subr.mxu0 0.0
      %1750 = vmatpush2.xpose.msra.mxu0 0.0
      %1751 = vmatprep.subr.mxu0 0.0
      %1752 = vmatpush2.xpose.msra.mxu0 0.0
      %1753 = vmatprep.subr.mxu0 0.0
      %1754 = vmatpush2.xpose.msra.mxu0 0.0
      %1755 = vmatprep.mubr.f32.mxu0 %v1681
      %1756 = vmatmul.mubr.f32.gmra.mxu0 %v1680
      %v1757 = vpop.f32.mrf.mxu0
      %v1758 = vadd.f32 0.0, %v1757
      %v1759 = vpop.f32.mrf.mxu0
      %1760 = vdwg.mxu0
      %v1761 = vmul.f32 %v1758, %v461
      %v1762 = vmax.f32 %v1761, 0.0
      %v1764 = vsel %vm534, %v1762, 0
      %1766 = vmatprep.subr.mxu0 0.0
      %1767 = vmatpush1.msra.mxu0 0.0
      %1768 = vmatprep.subr.mxu0 0.0
      %1769 = vmatpush1.msra.mxu0 0.0
      %1770 = vmatprep.subr.mxu0 0.0
      %1771 = vmatpush1.msra.mxu0 0.0
      %1772 = vmatprep.subr.mxu0 0.0
      %1773 = vmatpush1.msra.mxu0 0.0
      %1774 = vmatprep.subr.mxu0 0.0
      %1775 = vmatpush1.msra.mxu0 0.0
      %1776 = vmatprep.subr.mxu0 0.0
      %1777 = vmatpush1.msra.mxu0 0.0
      %1778 = vmatprep.subr.mxu0 0.0
      %1779 = vmatpush1.msra.mxu0 0.0
      %1780 = vmatprep.subr.mxu0 0.0
      %1781 = vmatpush1.msra.mxu0 0.0
      %1782 = vmatprep.subr.mxu0 0.0
      %1783 = vmatpush1.msra.mxu0 0.0
      %1784 = vmatprep.subr.mxu0 0.0
      %1785 = vmatpush1.msra.mxu0 0.0
      %1786 = vmatprep.subr.mxu0 0.0
      %1787 = vmatpush1.msra.mxu0 0.0
      %1788 = vmatprep.subr.mxu0 0.0
      %1789 = vmatpush1.msra.mxu0 0.0
      %1790 = vmatprep.subr.mxu0 0.0
      %1791 = vmatpush1.msra.mxu0 0.0
      %1792 = vmatprep.subr.mxu0 0.0
      %1793 = vmatpush1.msra.mxu0 0.0
      %1794 = vmatprep.subr.mxu0 0.0
      %1795 = vmatpush1.msra.mxu0 0.0
      %1796 = vmatprep.subr.mxu0 %v1669
      %1797 = vmatpush1.msra.mxu0 %v1668
      %1798 = vmatprep.subr.mxu0 0.0
      %1799 = vmatpush2.msra.mxu0 0.0
      %1800 = vmatprep.subr.mxu0 0.0
      %1801 = vmatpush2.msra.mxu0 0.0
      %1802 = vmatprep.subr.mxu0 0.0
      %1803 = vmatpush2.msra.mxu0 0.0
      %1804 = vmatprep.subr.mxu0 0.0
      %1805 = vmatpush2.msra.mxu0 0.0
      %1806 = vmatprep.subr.mxu0 0.0
      %1807 = vmatpush2.msra.mxu0 0.0
      %1808 = vmatprep.subr.mxu0 0.0
      %1809 = vmatpush2.msra.mxu0 0.0
      %1810 = vmatprep.subr.mxu0 0.0
      %1811 = vmatpush2.msra.mxu0 0.0
      %1812 = vmatprep.subr.mxu0 0.0
      %1813 = vmatpush2.msra.mxu0 0.0
      %1814 = vmatprep.subr.mxu0 0.0
      %1815 = vmatpush2.msra.mxu0 0.0
      %1816 = vmatprep.subr.mxu0 0.0
      %1817 = vmatpush2.msra.mxu0 0.0
      %1818 = vmatprep.subr.mxu0 0.0
      %1819 = vmatpush2.msra.mxu0 0.0
      %1820 = vmatprep.subr.mxu0 0.0
      %1821 = vmatpush2.msra.mxu0 0.0
      %1822 = vmatprep.subr.mxu0 0.0
      %1823 = vmatpush2.msra.mxu0 0.0
      %1824 = vmatprep.subr.mxu0 0.0
      %1825 = vmatpush2.msra.mxu0 0.0
      %1826 = vmatprep.subr.mxu0 0.0
      %1827 = vmatpush2.msra.mxu0 0.0
      %1828 = vmatprep.subr.mxu0 0.0
      %1829 = vmatpush2.msra.mxu0 0.0
      %1830 = vmatprep.mubr.f32.mxu0 0.0
      %1831 = vmatmul.mubr.f32.gmra.mxu0 %v1764
      %v1832 = vpop.f32.mrf.mxu0
      %v1833 = vadd.f32 0.0, %v1832
      %v1834 = vpop.f32.mrf.mxu0
      %v1835 = vadd.f32 0.0, %v1834
      %1836 = vdwg.mxu0
      %v1837 = vmul.f32 %v1833, %v1468
      %v1838 = vmul.f32 %v1835, %v1469
      %1839 = vmatprep.subr.mxu0 0.0
      %1840 = vmatpush1.msra.mxu0 0.0
      %1841 = vmatprep.subr.mxu0 0.0
      %1842 = vmatpush1.msra.mxu0 0.0
      %1843 = vmatprep.subr.mxu0 0.0
      %1844 = vmatpush1.msra.mxu0 0.0
      %1845 = vmatprep.subr.mxu0 0.0
      %1846 = vmatpush1.msra.mxu0 0.0
      %1847 = vmatprep.subr.mxu0 0.0
      %1848 = vmatpush1.msra.mxu0 0.0
      %1849 = vmatprep.subr.mxu0 0.0
      %1850 = vmatpush1.msra.mxu0 0.0
      %1851 = vmatprep.subr.mxu0 0.0
      %1852 = vmatpush1.msra.mxu0 0.0
      %1853 = vmatprep.subr.mxu0 0.0
      %1854 = vmatpush1.msra.mxu0 0.0
      %1855 = vmatprep.subr.mxu0 0.0
      %1856 = vmatpush1.msra.mxu0 0.0
      %1857 = vmatprep.subr.mxu0 0.0
      %1858 = vmatpush1.msra.mxu0 0.0
      %1859 = vmatprep.subr.mxu0 0.0
      %1860 = vmatpush1.msra.mxu0 0.0
      %1861 = vmatprep.subr.mxu0 0.0
      %1862 = vmatpush1.msra.mxu0 0.0
      %1863 = vmatprep.subr.mxu0 0.0
      %1864 = vmatpush1.msra.mxu0 0.0
      %1865 = vmatprep.subr.mxu0 0.0
      %1866 = vmatpush1.msra.mxu0 0.0
      %1867 = vmatprep.subr.mxu0 0.0
      %1868 = vmatpush1.msra.mxu0 0.0
      %1869 = vmatprep.subr.mxu0 %v1838
      %1870 = vmatpush1.msra.mxu0 %v1837
      %1871 = vmatprep.subr.mxu0 0.0
      %1872 = vmatpush2.msra.mxu0 0.0
      %1873 = vmatprep.subr.mxu0 0.0
      %1874 = vmatpush2.msra.mxu0 0.0
      %1875 = vmatprep.subr.mxu0 0.0
      %1876 = vmatpush2.msra.mxu0 0.0
      %1877 = vmatprep.subr.mxu0 0.0
      %1878 = vmatpush2.msra.mxu0 0.0
      %1879 = vmatprep.subr.mxu0 0.0
      %1880 = vmatpush2.msra.mxu0 0.0
      %1881 = vmatprep.subr.mxu0 0.0
      %1882 = vmatpush2.msra.mxu0 0.0
      %1883 = vmatprep.subr.mxu0 0.0
      %1884 = vmatpush2.msra.mxu0 0.0
      %1885 = vmatprep.subr.mxu0 0.0
      %1886 = vmatpush2.msra.mxu0 0.0
      %1887 = vmatprep.subr.mxu0 0.0
      %1888 = vmatpush2.msra.mxu0 0.0
      %1889 = vmatprep.subr.mxu0 0.0
      %1890 = vmatpush2.msra.mxu0 0.0
      %1891 = vmatprep.subr.mxu0 0.0
      %1892 = vmatpush2.msra.mxu0 0.0
      %1893 = vmatprep.subr.mxu0 0.0
      %1894 = vmatpush2.msra.mxu0 0.0
      %1895 = vmatprep.subr.mxu0 0.0
      %1896 = vmatpush2.msra.mxu0 0.0
      %1897 = vmatprep.subr.mxu0 0.0
      %1898 = vmatpush2.msra.mxu0 0.0
      %1899 = vmatprep.subr.mxu0 0.0
      %1900 = vmatpush2.msra.mxu0 0.0
      %1901 = vmatprep.subr.mxu0 0.0
      %1902 = vmatpush2.msra.mxu0 0.0
      %1903 = vmatprep.mubr.f32.mxu0 0.0
      %1904 = vmatmul.mubr.f32.gmra.mxu0 %v1213
      %v1905 = vpop.f32.mrf.mxu0
      %v1906 = vadd.f32 %v1210, %v1905
      %v1907 = vpop.f32.mrf.mxu0
      %v1908 = vadd.f32 %v1210, %v1907
      %1909 = vdwg.mxu0
      %s1910 = scalar_lea.vmem %s445, 16
      %1911 = vst [vmem:[%s1910] sm:$0xff] %v1906
      %1912 = vst [vmem:[%s1910 + $0x8] sm:$0xff] %v1908
      %s1913 = smul.u32 2, %s23
      %p1914 = scmp.lt.s32.totalorder %s1913, 3
      %s1915 = scalar_select %p1914, %s1913, 3
      %s1916 = smul.addr %s1915, 2
      %s1917 = smul.addr %s1916, 8
      %s1918 = scalar_lea.vmem %s12, %s1917
      // Predicated region
      $region69: #{wsa_forward.1} parent=67 // pred_check
        %p1919 = pneg %p303
      $region70: #{wsa_forward.1} parent=67 // pred_check_branch
        %1921 = sbr.rel (%p1919) target = $region72
      $region71: #{wsa_forward.1} parent=67 // pred_region
        %s1922 = smul.u32 2, %s23
      $region72: #{wsa_forward.1} parent=67 // pred_fallthru
        _
    $region68: #{wsa_forward.1} parent=5 // pred_fallthru
      _
    %p1923 = scmp.le.s32.totalorder 2, %s18
    // Predicated region
    $region73: #{wsa_forward.1} parent=5 // pred_check
      %p1924 = pneg %p1923
    $region74: #{wsa_forward.1} parent=5 // pred_check_branch
      %1926 = sbr.rel (%p1924) target = $region76
    $region75: #{wsa_forward.1} parent=5 // pred_region
      %s1927 = ssub.s32 %s18, 2
      // Predicated region
      $region77: #{wsa_forward.1} parent=75 // pred_check
        %p1928 = pneg %p309
      $region78: #{wsa_forward.1} parent=75 // pred_check_branch
        %1930 = sbr.rel (%p1928) target = $region80
      $region79: #{wsa_forward.1} parent=75 // pred_region
        %s1931 = smul.u32 2, %s24
        %p1932 = scmp.lt.s32.totalorder %s1931, 3
        %s1933 = scalar_select %p1932, %s1931, 3
        %s1934 = smul.addr %s1933, 2
        %s1935 = smul.addr %s1934, 8
        %s1936 = scalar_lea.vmem %s12, %s1935
      $region80: #{wsa_forward.1} parent=75 // pred_fallthru
        _
    $region76: #{wsa_forward.1} parent=5 // pred_fallthru
      _
  $region6: #{wsa_forward.1} parent=0 // loop_footer
    %s22 = sadd.s32 1, %s18
  $region7: #{wsa_forward.1} parent=0 // loop_footer_branch
    %17 = sbr.rel target = $region3
  $region8: #{wsa_forward.1} parent=0 // loop_exit
    _

</llo_original>
